<compile_context>
chip_gen: v5e
topology: v5e:2x2
jax: 0.10.0
libtpu: 0.0.40
codegen_flags: <defaults>
</compile_context>

<pallas_src>
import functools
import math

import jax
import jax.numpy as jnp
from jax.experimental import pallas as pl
from jax.experimental.pallas import tpu as pltpu


# ----------------------------------------------------------------------------
# Pallas kernel
# ----------------------------------------------------------------------------
def _spatial_attn_kernel(x_ref, mask_ref, lhs_ref, cmask_ref, w_ref, bn_ref,
                         out_ref, pad_ref, *, C, C_im, C_sub, H, W, OFF, use_mxu):
    # x_ref:     (1, C, HW)   VMEM, lane-dense block for this batch element
    # mask_ref:  (1, C, 1)    VMEM, 1.0 for important channels, else 0.0
    # lhs_ref:   (1, 8, C)    VMEM, rows: [mask, ones, 0, ...]  (MXU pooling LHS)
    # cmask_ref: (7, HW)      VMEM, per-kx column-validity masks (flat-conv wraparound)
    # w_ref:     (98,)        SMEM, BN-scale-folded conv weight (1, 2, 7, 7) flattened
    #                         as [c*49 + ky*7 + kx]
    # bn_ref:    (1,)         SMEM, [bn_shift] (folded inference BatchNorm shift)
    # out_ref:   (1, C, HW)   VMEM output block
    # pad_ref:   (2, 2, PADW) VMEM scratch: zero-padded flat pooled rows;
    #                         axis0: {avg, max}, axis1: {im, sub}, interior at [OFF:OFF+HW]
    HW = H * W
    PADW = pad_ref.shape[-1]

    x = x_ref[0]              # (C, HW)
    m_col = mask_ref[0]       # (C, 1)

    imp = m_col * x           # important features (C, HW)
    sub = x - imp             # sub-important features; exact since mask is 0/1

    # ---- channel pooling ----------------------------------------------------
    if use_mxu:
        # Sum-pools on the (otherwise idle) MXU: rows 0/1 of [mask; ones] @ x.
        sums = jnp.dot(lhs_ref[0], x, preferred_element_type=jnp.float32)  # (8, HW)
        im_sum = sums[0:1, :]
        tot_sum = sums[1:2, :]
    else:
        # Small C: a couple of sublane adds on the VPU is cheaper than an MXU launch.
        im_sum = jnp.sum(imp, axis=0, keepdims=True)       # (1, HW)
        tot_sum = jnp.sum(x, axis=0, keepdims=True)        # (1, HW)
    sub_sum = tot_sum - im_sum

    # mean(imp)*(C/C_im) == im_sum / C_im   (same for the sub branch)
    im_avg = im_sum * (1.0 / float(C_im))
    sub_avg = sub_sum * (1.0 / float(C_sub))
    im_max = jnp.max(imp, axis=0, keepdims=True)           # (1, HW)
    sub_max = jnp.max(sub, axis=0, keepdims=True)          # (1, HW)

    # ---- stage zero-padded flat rows for the conv ---------------------------
    # Only the halo needs zeroing each step; the interior is fully rewritten.
    pad_ref[:, :, 0:OFF] = jnp.zeros((2, 2, OFF), jnp.float32)
    pad_ref[:, :, OFF + HW:] = jnp.zeros((2, 2, PADW - OFF - HW), jnp.float32)
    pad_ref[0, 0:1, OFF:OFF + HW] = im_avg
    pad_ref[0, 1:2, OFF:OFF + HW] = sub_avg
    pad_ref[1, 0:1, OFF:OFF + HW] = im_max
    pad_ref[1, 1:2, OFF:OFF + HW] = sub_max

    # ---- 7x7 Conv2d(2->1, padding=3, bias=False) in the flat domain ---------
    # out[p] = sum_{ky,kx} w[c,ky,kx] * plane_c[p + (ky-3)*W + (kx-3)]
    # Row (y) out-of-range lands in the zero halo; column (x) wraparound is killed by
    # the per-kx column mask (applied once per kx, after accumulating over ky).
    # im and sub are stacked on the sublane axis -> 2 MACs per tap instead of 4.
    acc = jnp.zeros((2, HW), jnp.float32)          # row 0: conv(im), row 1: conv(sub)
    for kx in range(7):
        inner = jnp.zeros((2, HW), jnp.float32)
        for ky in range(7):
            off = OFF + (ky - 3) * W + (kx - 3)
            w_avg = w_ref[0 * 49 + ky * 7 + kx]    # weight on the avg-pool channel
            w_max = w_ref[1 * 49 + ky * 7 + kx]    # weight on the max-pool channel
            inner = inner + w_avg * pad_ref[0, :, off:off + HW] \
                          + w_max * pad_ref[1, :, off:off + HW]
        acc = acc + cmask_ref[kx:kx + 1, :] * inner

    # ---- norm_active = BatchNorm2d(1) -> ReLU -> Sigmoid ---------------------
    # TODO(synk): BatchNorm2d is implemented in inference mode (running stats folded
    # into the conv weights / shift); training-mode batch statistics are not reproduced.
    shift = bn_ref[0]
    z = jnp.maximum(acc + shift, 0.0)              # (2, HW); scale already in weights
    # Exact sigmoid (matches the reference bit-tightly); the divide's reciprocal could
    # be pushed to the EUP with pl.reciprocal(..., approx=True) at a tiny accuracy cost.
    a = 1.0 / (1.0 + jnp.exp(-z))
    a_im = a[0:1, :]                               # A_S1, (1, HW)
    a_sub = a[1:2, :]                              # A_S2, (1, HW)

    # refined = imp*A_S1 + sub*A_S2  ==  x*A_S2 + imp*(A_S1 - A_S2)
    out = x * a_sub + imp * (a_im - a_sub)
    out_ref[0] = out.astype(out_ref.dtype)


# ----------------------------------------------------------------------------
# Wrapper (glue: top-k channel mask, lane-dense reshapes, pallas_call)
# ----------------------------------------------------------------------------
def get_important_channel_num(C, lam=0.6):
    t = lam * C
    floor = math.floor(t)
    return floor + floor % 2


def spatial_attention(x, M, conv_w, bn_scale, bn_shift, *, lam=0.6):
    """x: (B, C, H, W) float32; M: (B, C, 1, 1) float32 channel-attention map."""
    B, C, H, W = x.shape
    HW = H * W
    C_im = get_important_channel_num(C, lam)
    C_sub = C - C_im
    if C_im <= 0 or C_sub <= 0:
        raise ValueError(f"Degenerate channel split: C={C}, C_im={C_im}, C_sub={C_sub}")

    # torch.topk + scatter-ones -> 0/1 channel masks (tiny setup, plain JAX).
    m = M[:, :, 0, 0]                                        # (B, C)
    _, topk_idx = jax.lax.top_k(m, C_im)                     # (B, C_im)
    mask = jnp.zeros((B, C), jnp.float32).at[
        jnp.arange(B)[:, None], topk_idx].set(1.0)
    mask_col = mask[:, :, None]                              # (B, C, 1)

    # MXU pooling LHS, padded to 8 rows: [mask; ones; 0...]  (used when C is large).
    pool_lhs = jnp.zeros((B, 8, C), jnp.float32)
    pool_lhs = pool_lhs.at[:, 0, :].set(mask)
    pool_lhs = pool_lhs.at[:, 1, :].set(1.0)
    use_mxu = C >= 64

    # Per-kx column-validity masks for the flat-domain conv (kills x wraparound).
    xs = jnp.arange(HW, dtype=jnp.int32) % W                 # x coordinate per flat pos
    col_masks = jnp.stack(
        [((xs + (kx - 3) >= 0) & (xs + (kx - 3) < W)).astype(jnp.float32)
         for kx in range(7)], axis=0)                        # (7, HW)

    # Zero halo wide enough for the largest flat shift (3*W + 3), rounded to lanes.
    OFF = ((3 * W + 3 + 127) // 128) * 128
    PADW = OFF + HW + OFF

    x_flat = x.reshape(B, C, HW)                             # lane-dense view (free)
    # Fold the inference BatchNorm scale into the conv weights (exact: conv is linear).
    w_flat = (conv_w.astype(jnp.float32) * jnp.float32(bn_scale)).reshape(-1)  # (98,)
    bn = jnp.array([bn_shift], jnp.float32)                  # (1,) shift only

    kernel = functools.partial(_spatial_attn_kernel,
                               C=C, C_im=C_im, C_sub=C_sub, H=H, W=W,
                               OFF=OFF, use_mxu=use_mxu)

    out_flat = pl.pallas_call(
        kernel,
        out_shape=jax.ShapeDtypeStruct((B, C, HW), x.dtype),
        grid_spec=pltpu.PrefetchScalarGridSpec(
            num_scalar_prefetch=0,
            grid=(B,),
            in_specs=[
                pl.BlockSpec((1, C, HW), lambda b: (b, 0, 0)),   # x (lane-dense)
                pl.BlockSpec((1, C, 1), lambda b: (b, 0, 0)),    # channel mask column
                pl.BlockSpec((1, 8, C), lambda b: (b, 0, 0)),    # pooling LHS (MXU path)
                pl.BlockSpec((7, HW), lambda b: (0, 0)),         # conv column masks
                pl.BlockSpec(memory_space=pltpu.SMEM),           # folded conv weights
                pl.BlockSpec(memory_space=pltpu.SMEM),           # bn shift
            ],
            out_specs=pl.BlockSpec((1, C, HW), lambda b: (b, 0, 0)),
            scratch_shapes=[pltpu.VMEM((2, 2, PADW), jnp.float32)],
        ),
        # Batch elements are independent -> shard across TensorCores on v7x.
        compiler_params=pltpu.CompilerParams(dimension_semantics=("parallel",)),
    )(x_flat, mask_col, pool_lhs, col_masks, w_flat, bn)

    return out_flat.reshape(B, C, H, W)


# ----------------------------------------------------------------------------
# Pure-JAX reference (for correctness check)
# ----------------------------------------------------------------------------
def spatial_attention_reference(x, M, conv_w, bn_scale, bn_shift, *, lam=0.6):
    B, C, H, W = x.shape
    C_im = get_important_channel_num(C, lam)
    C_sub = C - C_im
    m = M[:, :, 0, 0]
    _, topk_idx = jax.lax.top_k(m, C_im)
    mask = jnp.zeros((B, C), x.dtype).at[jnp.arange(B)[:, None], topk_idx].set(1.0)
    mask = mask[:, :, None, None]
    imp = mask * x
    sub = (1.0 - mask) * x
    im_avg = jnp.mean(imp, axis=1, keepdims=True) * (C / C_im)
    im_max = jnp.max(imp, axis=1, keepdims=True)
    sub_avg = jnp.mean(sub, axis=1, keepdims=True) * (C / C_sub)
    sub_max = jnp.max(sub, axis=1, keepdims=True)
    im_x = jnp.concatenate([im_avg, im_max], axis=1)
    sub_x = jnp.concatenate([sub_avg, sub_max], axis=1)

    def conv(t):
        return jax.lax.conv_general_dilated(
            t, conv_w, window_strides=(1, 1), padding=[(3, 3), (3, 3)],
            dimension_numbers=("NCHW", "OIHW", "NCHW"))

    def act(z):
        return 1.0 / (1.0 + jnp.exp(-jnp.maximum(z * bn_scale + bn_shift, 0.0)))

    A1 = act(conv(im_x))
    A2 = act(conv(sub_x))
    return imp * A1 + sub * A2


# ----------------------------------------------------------------------------
if __name__ == "__main__":
    key = jax.random.PRNGKey(0)
    kx_key, km_key, kw_key = jax.random.split(key, 3)

    B, C, H, W = 2, 4, 16, 16
    x = jax.random.normal(kx_key, (B, C, H, W), dtype=jnp.float32)
    M = jax.random.uniform(km_key, (B, C, 1, 1), dtype=jnp.float32)  # channel attention

    # Deterministic parameter init (shapes from the module's __init__).
    # Conv2d(2, 1, kernel_size=7, bias=False): kaiming-uniform-ish bound.
    fan_in = 2 * 7 * 7
    bound = 1.0 / math.sqrt(fan_in)
    conv_w = jax.random.uniform(kw_key, (1, 2, 7, 7), dtype=jnp.float32,
                                minval=-bound, maxval=bound)
    # BatchNorm2d(1) inference-mode defaults: gamma=1, beta=0, mean=0, var=1, eps=1e-5
    eps = 1e-5
    bn_scale = 1.0 / math.sqrt(1.0 + eps)
    bn_shift = 0.0

    out = spatial_attention(x, M, conv_w, bn_scale, bn_shift)
    out = jax.block_until_ready(out)

    ref = spatial_attention_reference(x, M, conv_w, bn_scale, bn_shift)
    assert out.shape == (B, C, H, W)
    if not jnp.allclose(out, ref, atol=2e-5, rtol=2e-5):
        raise AssertionError("Pallas kernel output does not match JAX reference")

    print("KERNEL_OK")
</pallas_src>

<mosaic_0001>
module attributes {stable_mosaic.version = 11 : i64} {
  func.func @_spatial_attn_kernel(%arg0: i32, %arg1: memref<1x4x256xf32, #tpu.memory_space<vmem>>, %arg2: memref<1x4x1xf32, #tpu.memory_space<vmem>>, %arg3: memref<1x8x4xf32, #tpu.memory_space<vmem>>, %arg4: memref<7x256xf32, #tpu.memory_space<vmem>>, %arg5: memref<98xf32, #tpu.memory_space<smem>>, %arg6: memref<1xf32, #tpu.memory_space<smem>>, %arg7: memref<1x4x256xf32, #tpu.memory_space<vmem>>, %arg8: memref<2x2x512xf32, #tpu.memory_space<vmem>>) attributes {dimension_semantics = [#tpu.dimension_semantics<parallel>], iteration_bounds = array<i64: 2>, scalar_prefetch = 0 : i64, scratch_operands = 1 : i64, tpu.core_type = #tpu.core_type<tc>, window_params = [{transform_indices = @transform_0, window_bounds = array<i64: 1, 4, 256>}, {transform_indices = @transform_1, window_bounds = array<i64: 1, 4, 1>}, {transform_indices = @transform_2, window_bounds = array<i64: 1, 8, 4>}, {pipeline_mode = #tpu.pipeline_mode<synchronous>, transform_indices = @transform_3, window_bounds = array<i64: 7, 256>}, {transform_indices = @transform_4, window_bounds = array<i64: 98>}, {transform_indices = @transform_5, window_bounds = array<i64: 1>}, {transform_indices = @transform_6, window_bounds = array<i64: 1, 4, 256>}]} {
    %c0 = arith.constant 0 : index
    %c0_0 = arith.constant 0 : index
    %c0_1 = arith.constant 0 : index
    %0 = vector.load %arg1[%c0, %c0_0, %c0_1] : memref<1x4x256xf32, #tpu.memory_space<vmem>>, vector<1x4x256xf32>
    %1 = vector.shape_cast %0 : vector<1x4x256xf32> to vector<4x256xf32>
    %c0_2 = arith.constant 0 : index
    %c0_3 = arith.constant 0 : index
    %c0_4 = arith.constant 0 : index
    %2 = vector.load %arg2[%c0_2, %c0_3, %c0_4] : memref<1x4x1xf32, #tpu.memory_space<vmem>>, vector<1x4x1xf32>
    %3 = vector.shape_cast %2 : vector<1x4x1xf32> to vector<4x1xf32>
    %4 = vector.broadcast %3 : vector<4x1xf32> to vector<4x256xf32>
    %5 = arith.mulf %4, %1 : vector<4x256xf32>
    %6 = arith.subf %1, %5 : vector<4x256xf32>
    %cst = arith.constant dense<0.000000e+00> : vector<256xf32>
    %7 = vector.multi_reduction <add>, %5, %cst [0] : vector<4x256xf32> to vector<256xf32>
    %8 = vector.shape_cast %7 : vector<256xf32> to vector<1x256xf32>
    %cst_5 = arith.constant dense<0.000000e+00> : vector<256xf32>
    %9 = vector.multi_reduction <add>, %1, %cst_5 [0] : vector<4x256xf32> to vector<256xf32>
    %10 = vector.shape_cast %9 : vector<256xf32> to vector<1x256xf32>
    %11 = arith.subf %10, %8 : vector<1x256xf32>
    %cst_6 = arith.constant 5.000000e-01 : f32
    %12 = vector.broadcast %cst_6 : f32 to vector<1x256xf32>
    %13 = arith.mulf %8, %12 : vector<1x256xf32>
    %cst_7 = arith.constant 5.000000e-01 : f32
    %14 = vector.broadcast %cst_7 : f32 to vector<1x256xf32>
    %15 = arith.mulf %11, %14 : vector<1x256xf32>
    %cst_8 = arith.constant dense<0xFF800000> : vector<256xf32>
    %16 = vector.multi_reduction <maximumf>, %5, %cst_8 [0] : vector<4x256xf32> to vector<256xf32>
    %17 = vector.shape_cast %16 : vector<256xf32> to vector<1x256xf32>
    %cst_9 = arith.constant dense<0xFF800000> : vector<256xf32>
    %18 = vector.multi_reduction <maximumf>, %6, %cst_9 [0] : vector<4x256xf32> to vector<256xf32>
    %19 = vector.shape_cast %18 : vector<256xf32> to vector<1x256xf32>
    %cst_10 = arith.constant 0.000000e+00 : f32
    %20 = vector.broadcast %cst_10 : f32 to vector<2x2x128xf32>
    %c0_11 = arith.constant 0 : index
    %c0_12 = arith.constant 0 : index
    %c0_13 = arith.constant 0 : index
    %21 = vector.load %arg8[%c0_11, %c0_12, %c0_13] : memref<2x2x512xf32, #tpu.memory_space<vmem>>, vector<2x2x128xf32>
    tpu.vector_store %arg8[%c0_11, %c0_12, %c0_13], %20 {strides = array<i32>} : memref<2x2x512xf32, #tpu.memory_space<vmem>>, vector<2x2x128xf32>,
    %cst_14 = arith.constant 0.000000e+00 : f32
    %22 = vector.broadcast %cst_14 : f32 to vector<2x2x128xf32>
    %c0_15 = arith.constant 0 : index
    %c0_16 = arith.constant 0 : index
    %c384 = arith.constant 384 : index
    %23 = vector.load %arg8[%c0_15, %c0_16, %c384] : memref<2x2x512xf32, #tpu.memory_space<vmem>>, vector<2x2x128xf32>
    tpu.vector_store %arg8[%c0_15, %c0_16, %c384], %22 {strides = array<i32>} : memref<2x2x512xf32, #tpu.memory_space<vmem>>, vector<2x2x128xf32>,
    %c0_17 = arith.constant 0 : index
    %c0_18 = arith.constant 0 : index
    %c128 = arith.constant 128 : index
    %24 = vector.load %arg8[%c0_17, %c0_18, %c128] : memref<2x2x512xf32, #tpu.memory_space<vmem>>, vector<1x1x256xf32>
    %25 = vector.shape_cast %24 : vector<1x1x256xf32> to vector<1x256xf32>
    %26 = vector.shape_cast %13 : vector<1x256xf32> to vector<1x1x256xf32>
    tpu.vector_store %arg8[%c0_17, %c0_18, %c128], %26 {strides = array<i32>} : memref<2x2x512xf32, #tpu.memory_space<vmem>>, vector<1x1x256xf32>,
    %c0_19 = arith.constant 0 : index
    %c1 = arith.constant 1 : index
    %c128_20 = arith.constant 128 : index
    %27 = vector.load %arg8[%c0_19, %c1, %c128_20] : memref<2x2x512xf32, #tpu.memory_space<vmem>>, vector<1x1x256xf32>
    %28 = vector.shape_cast %27 : vector<1x1x256xf32> to vector<1x256xf32>
    %29 = vector.shape_cast %15 : vector<1x256xf32> to vector<1x1x256xf32>
    tpu.vector_store %arg8[%c0_19, %c1, %c128_20], %29 {strides = array<i32>} : memref<2x2x512xf32, #tpu.memory_space<vmem>>, vector<1x1x256xf32>,
    %c1_21 = arith.constant 1 : index
    %c0_22 = arith.constant 0 : index
    %c128_23 = arith.constant 128 : index
    %30 = vector.load %arg8[%c1_21, %c0_22, %c128_23] : memref<2x2x512xf32, #tpu.memory_space<vmem>>, vector<1x1x256xf32>
    %31 = vector.shape_cast %30 : vector<1x1x256xf32> to vector<1x256xf32>
    %32 = vector.shape_cast %17 : vector<1x256xf32> to vector<1x1x256xf32>
    tpu.vector_store %arg8[%c1_21, %c0_22, %c128_23], %32 {strides = array<i32>} : memref<2x2x512xf32, #tpu.memory_space<vmem>>, vector<1x1x256xf32>,
    %c1_24 = arith.constant 1 : index
    %c1_25 = arith.constant 1 : index
    %c128_26 = arith.constant 128 : index
    %33 = vector.load %arg8[%c1_24, %c1_25, %c128_26] : memref<2x2x512xf32, #tpu.memory_space<vmem>>, vector<1x1x256xf32>
    %34 = vector.shape_cast %33 : vector<1x1x256xf32> to vector<1x256xf32>
    %35 = vector.shape_cast %19 : vector<1x256xf32> to vector<1x1x256xf32>
    tpu.vector_store %arg8[%c1_24, %c1_25, %c128_26], %35 {strides = array<i32>} : memref<2x2x512xf32, #tpu.memory_space<vmem>>, vector<1x1x256xf32>,
    %cst_27 = arith.constant 0.000000e+00 : f32
    %36 = vector.broadcast %cst_27 : f32 to vector<2x256xf32>
    %cst_28 = arith.constant 0.000000e+00 : f32
    %37 = vector.broadcast %cst_28 : f32 to vector<2x256xf32>
    %c0_29 = arith.constant 0 : index
    %38 = memref.load %arg5[%c0_29] : memref<98xf32, #tpu.memory_space<smem>>
    %c49 = arith.constant 49 : index
    %39 = memref.load %arg5[%c49] : memref<98xf32, #tpu.memory_space<smem>>
    %c0_30 = arith.constant 0 : index
    %c0_31 = arith.constant 0 : index
    %c77 = arith.constant 77 : index
    %40 = vector.load %arg8[%c0_30, %c0_31, %c77] : memref<2x2x512xf32, #tpu.memory_space<vmem>>, vector<1x2x256xf32>
    %41 = vector.shape_cast %40 : vector<1x2x256xf32> to vector<2x256xf32>
    %42 = vector.broadcast %38 : f32 to vector<2x256xf32>
    %43 = arith.mulf %42, %41 : vector<2x256xf32>
    %44 = arith.addf %37, %43 : vector<2x256xf32>
    %c1_32 = arith.constant 1 : index
    %c0_33 = arith.constant 0 : index
    %c77_34 = arith.constant 77 : index
    %45 = vector.load %arg8[%c1_32, %c0_33, %c77_34] : memref<2x2x512xf32, #tpu.memory_space<vmem>>, vector<1x2x256xf32>
    %46 = vector.shape_cast %45 : vector<1x2x256xf32> to vector<2x256xf32>
    %47 = vector.broadcast %39 : f32 to vector<2x256xf32>
    %48 = arith.mulf %47, %46 : vector<2x256xf32>
    %49 = arith.addf %44, %48 : vector<2x256xf32>
    %c7 = arith.constant 7 : index
    %50 = memref.load %arg5[%c7] : memref<98xf32, #tpu.memory_space<smem>>
    %c56 = arith.constant 56 : index
    %51 = memref.load %arg5[%c56] : memref<98xf32, #tpu.memory_space<smem>>
    %c0_35 = arith.constant 0 : index
    %c0_36 = arith.constant 0 : index
    %c93 = arith.constant 93 : index
    %52 = vector.load %arg8[%c0_35, %c0_36, %c93] : memref<2x2x512xf32, #tpu.memory_space<vmem>>, vector<1x2x256xf32>
    %53 = vector.shape_cast %52 : vector<1x2x256xf32> to vector<2x256xf32>
    %54 = vector.broadcast %50 : f32 to vector<2x256xf32>
    %55 = arith.mulf %54, %53 : vector<2x256xf32>
    %56 = arith.addf %49, %55 : vector<2x256xf32>
    %c1_37 = arith.constant 1 : index
    %c0_38 = arith.constant 0 : index
    %c93_39 = arith.constant 93 : index
    %57 = vector.load %arg8[%c1_37, %c0_38, %c93_39] : memref<2x2x512xf32, #tpu.memory_space<vmem>>, vector<1x2x256xf32>
    %58 = vector.shape_cast %57 : vector<1x2x256xf32> to vector<2x256xf32>
    %59 = vector.broadcast %51 : f32 to vector<2x256xf32>
    %60 = arith.mulf %59, %58 : vector<2x256xf32>
    %61 = arith.addf %56, %60 : vector<2x256xf32>
    %c14 = arith.constant 14 : index
    %62 = memref.load %arg5[%c14] : memref<98xf32, #tpu.memory_space<smem>>
    %c63 = arith.constant 63 : index
    %63 = memref.load %arg5[%c63] : memref<98xf32, #tpu.memory_space<smem>>
    %c0_40 = arith.constant 0 : index
    %c0_41 = arith.constant 0 : index
    %c109 = arith.constant 109 : index
    %64 = vector.load %arg8[%c0_40, %c0_41, %c109] : memref<2x2x512xf32, #tpu.memory_space<vmem>>, vector<1x2x256xf32>
    %65 = vector.shape_cast %64 : vector<1x2x256xf32> to vector<2x256xf32>
    %66 = vector.broadcast %62 : f32 to vector<2x256xf32>
    %67 = arith.mulf %66, %65 : vector<2x256xf32>
    %68 = arith.addf %61, %67 : vector<2x256xf32>
    %c1_42 = arith.constant 1 : index
    %c0_43 = arith.constant 0 : index
    %c109_44 = arith.constant 109 : index
    %69 = vector.load %arg8[%c1_42, %c0_43, %c109_44] : memref<2x2x512xf32, #tpu.memory_space<vmem>>, vector<1x2x256xf32>
    %70 = vector.shape_cast %69 : vector<1x2x256xf32> to vector<2x256xf32>
    %71 = vector.broadcast %63 : f32 to vector<2x256xf32>
    %72 = arith.mulf %71, %70 : vector<2x256xf32>
    %73 = arith.addf %68, %72 : vector<2x256xf32>
    %c21 = arith.constant 21 : index
    %74 = memref.load %arg5[%c21] : memref<98xf32, #tpu.memory_space<smem>>
    %c70 = arith.constant 70 : index
    %75 = memref.load %arg5[%c70] : memref<98xf32, #tpu.memory_space<smem>>
    %c0_45 = arith.constant 0 : index
    %c0_46 = arith.constant 0 : index
    %c125 = arith.constant 125 : index
    %76 = vector.load %arg8[%c0_45, %c0_46, %c125] : memref<2x2x512xf32, #tpu.memory_space<vmem>>, vector<1x2x256xf32>
    %77 = vector.shape_cast %76 : vector<1x2x256xf32> to vector<2x256xf32>
    %78 = vector.broadcast %74 : f32 to vector<2x256xf32>
    %79 = arith.mulf %78, %77 : vector<2x256xf32>
    %80 = arith.addf %73, %79 : vector<2x256xf32>
    %c1_47 = arith.constant 1 : index
    %c0_48 = arith.constant 0 : index
    %c125_49 = arith.constant 125 : index
    %81 = vector.load %arg8[%c1_47, %c0_48, %c125_49] : memref<2x2x512xf32, #tpu.memory_space<vmem>>, vector<1x2x256xf32>
    %82 = vector.shape_cast %81 : vector<1x2x256xf32> to vector<2x256xf32>
    %83 = vector.broadcast %75 : f32 to vector<2x256xf32>
    %84 = arith.mulf %83, %82 : vector<2x256xf32>
    %85 = arith.addf %80, %84 : vector<2x256xf32>
    %c28 = arith.constant 28 : index
    %86 = memref.load %arg5[%c28] : memref<98xf32, #tpu.memory_space<smem>>
    %c77_50 = arith.constant 77 : index
    %87 = memref.load %arg5[%c77_50] : memref<98xf32, #tpu.memory_space<smem>>
    %c0_51 = arith.constant 0 : index
    %c0_52 = arith.constant 0 : index
    %c141 = arith.constant 141 : index
    %88 = vector.load %arg8[%c0_51, %c0_52, %c141] : memref<2x2x512xf32, #tpu.memory_space<vmem>>, vector<1x2x256xf32>
    %89 = vector.shape_cast %88 : vector<1x2x256xf32> to vector<2x256xf32>
    %90 = vector.broadcast %86 : f32 to vector<2x256xf32>
    %91 = arith.mulf %90, %89 : vector<2x256xf32>
    %92 = arith.addf %85, %91 : vector<2x256xf32>
    %c1_53 = arith.constant 1 : index
    %c0_54 = arith.constant 0 : index
    %c141_55 = arith.constant 141 : index
    %93 = vector.load %arg8[%c1_53, %c0_54, %c141_55] : memref<2x2x512xf32, #tpu.memory_space<vmem>>, vector<1x2x256xf32>
    %94 = vector.shape_cast %93 : vector<1x2x256xf32> to vector<2x256xf32>
    %95 = vector.broadcast %87 : f32 to vector<2x256xf32>
    %96 = arith.mulf %95, %94 : vector<2x256xf32>
    %97 = arith.addf %92, %96 : vector<2x256xf32>
    %c35 = arith.constant 35 : index
    %98 = memref.load %arg5[%c35] : memref<98xf32, #tpu.memory_space<smem>>
    %c84 = arith.constant 84 : index
    %99 = memref.load %arg5[%c84] : memref<98xf32, #tpu.memory_space<smem>>
    %c0_56 = arith.constant 0 : index
    %c0_57 = arith.constant 0 : index
    %c157 = arith.constant 157 : index
    %100 = vector.load %arg8[%c0_56, %c0_57, %c157] : memref<2x2x512xf32, #tpu.memory_space<vmem>>, vector<1x2x256xf32>
    %101 = vector.shape_cast %100 : vector<1x2x256xf32> to vector<2x256xf32>
    %102 = vector.broadcast %98 : f32 to vector<2x256xf32>
    %103 = arith.mulf %102, %101 : vector<2x256xf32>
    %104 = arith.addf %97, %103 : vector<2x256xf32>
    %c1_58 = arith.constant 1 : index
    %c0_59 = arith.constant 0 : index
    %c157_60 = arith.constant 157 : index
    %105 = vector.load %arg8[%c1_58, %c0_59, %c157_60] : memref<2x2x512xf32, #tpu.memory_space<vmem>>, vector<1x2x256xf32>
    %106 = vector.shape_cast %105 : vector<1x2x256xf32> to vector<2x256xf32>
    %107 = vector.broadcast %99 : f32 to vector<2x256xf32>
    %108 = arith.mulf %107, %106 : vector<2x256xf32>
    %109 = arith.addf %104, %108 : vector<2x256xf32>
    %c42 = arith.constant 42 : index
    %110 = memref.load %arg5[%c42] : memref<98xf32, #tpu.memory_space<smem>>
    %c91 = arith.constant 91 : index
    %111 = memref.load %arg5[%c91] : memref<98xf32, #tpu.memory_space<smem>>
    %c0_61 = arith.constant 0 : index
    %c0_62 = arith.constant 0 : index
    %c173 = arith.constant 173 : index
    %112 = vector.load %arg8[%c0_61, %c0_62, %c173] : memref<2x2x512xf32, #tpu.memory_space<vmem>>, vector<1x2x256xf32>
    %113 = vector.shape_cast %112 : vector<1x2x256xf32> to vector<2x256xf32>
    %114 = vector.broadcast %110 : f32 to vector<2x256xf32>
    %115 = arith.mulf %114, %113 : vector<2x256xf32>
    %116 = arith.addf %109, %115 : vector<2x256xf32>
    %c1_63 = arith.constant 1 : index
    %c0_64 = arith.constant 0 : index
    %c173_65 = arith.constant 173 : index
    %117 = vector.load %arg8[%c1_63, %c0_64, %c173_65] : memref<2x2x512xf32, #tpu.memory_space<vmem>>, vector<1x2x256xf32>
    %118 = vector.shape_cast %117 : vector<1x2x256xf32> to vector<2x256xf32>
    %119 = vector.broadcast %111 : f32 to vector<2x256xf32>
    %120 = arith.mulf %119, %118 : vector<2x256xf32>
    %121 = arith.addf %116, %120 : vector<2x256xf32>
    %c0_66 = arith.constant 0 : index
    %c0_67 = arith.constant 0 : index
    %122 = vector.load %arg4[%c0_66, %c0_67] : memref<7x256xf32, #tpu.memory_space<vmem>>, vector<1x256xf32>
    %123 = vector.broadcast %122 : vector<1x256xf32> to vector<2x256xf32>
    %124 = arith.mulf %123, %121 : vector<2x256xf32>
    %125 = arith.addf %36, %124 : vector<2x256xf32>
    %cst_68 = arith.constant 0.000000e+00 : f32
    %126 = vector.broadcast %cst_68 : f32 to vector<2x256xf32>
    %c1_69 = arith.constant 1 : index
    %127 = memref.load %arg5[%c1_69] : memref<98xf32, #tpu.memory_space<smem>>
    %c50 = arith.constant 50 : index
    %128 = memref.load %arg5[%c50] : memref<98xf32, #tpu.memory_space<smem>>
    %c0_70 = arith.constant 0 : index
    %c0_71 = arith.constant 0 : index
    %c78 = arith.constant 78 : index
    %129 = vector.load %arg8[%c0_70, %c0_71, %c78] : memref<2x2x512xf32, #tpu.memory_space<vmem>>, vector<1x2x256xf32>
    %130 = vector.shape_cast %129 : vector<1x2x256xf32> to vector<2x256xf32>
    %131 = vector.broadcast %127 : f32 to vector<2x256xf32>
    %132 = arith.mulf %131, %130 : vector<2x256xf32>
    %133 = arith.addf %126, %132 : vector<2x256xf32>
    %c1_72 = arith.constant 1 : index
    %c0_73 = arith.constant 0 : index
    %c78_74 = arith.constant 78 : index
    %134 = vector.load %arg8[%c1_72, %c0_73, %c78_74] : memref<2x2x512xf32, #tpu.memory_space<vmem>>, vector<1x2x256xf32>
    %135 = vector.shape_cast %134 : vector<1x2x256xf32> to vector<2x256xf32>
    %136 = vector.broadcast %128 : f32 to vector<2x256xf32>
    %137 = arith.mulf %136, %135 : vector<2x256xf32>
    %138 = arith.addf %133, %137 : vector<2x256xf32>
    %c8 = arith.constant 8 : index
    %139 = memref.load %arg5[%c8] : memref<98xf32, #tpu.memory_space<smem>>
    %c57 = arith.constant 57 : index
    %140 = memref.load %arg5[%c57] : memref<98xf32, #tpu.memory_space<smem>>
    %c0_75 = arith.constant 0 : index
    %c0_76 = arith.constant 0 : index
    %c94 = arith.constant 94 : index
    %141 = vector.load %arg8[%c0_75, %c0_76, %c94] : memref<2x2x512xf32, #tpu.memory_space<vmem>>, vector<1x2x256xf32>
    %142 = vector.shape_cast %141 : vector<1x2x256xf32> to vector<2x256xf32>
    %143 = vector.broadcast %139 : f32 to vector<2x256xf32>
    %144 = arith.mulf %143, %142 : vector<2x256xf32>
    %145 = arith.addf %138, %144 : vector<2x256xf32>
    %c1_77 = arith.constant 1 : index
    %c0_78 = arith.constant 0 : index
    %c94_79 = arith.constant 94 : index
    %146 = vector.load %arg8[%c1_77, %c0_78, %c94_79] : memref<2x2x512xf32, #tpu.memory_space<vmem>>, vector<1x2x256xf32>
    %147 = vector.shape_cast %146 : vector<1x2x256xf32> to vector<2x256xf32>
    %148 = vector.broadcast %140 : f32 to vector<2x256xf32>
    %149 = arith.mulf %148, %147 : vector<2x256xf32>
    %150 = arith.addf %145, %149 : vector<2x256xf32>
    %c15 = arith.constant 15 : index
    %151 = memref.load %arg5[%c15] : memref<98xf32, #tpu.memory_space<smem>>
    %c64 = arith.constant 64 : index
    %152 = memref.load %arg5[%c64] : memref<98xf32, #tpu.memory_space<smem>>
    %c0_80 = arith.constant 0 : index
    %c0_81 = arith.constant 0 : index
    %c110 = arith.constant 110 : index
    %153 = vector.load %arg8[%c0_80, %c0_81, %c110] : memref<2x2x512xf32, #tpu.memory_space<vmem>>, vector<1x2x256xf32>
    %154 = vector.shape_cast %153 : vector<1x2x256xf32> to vector<2x256xf32>
    %155 = vector.broadcast %151 : f32 to vector<2x256xf32>
    %156 = arith.mulf %155, %154 : vector<2x256xf32>
    %157 = arith.addf %150, %156 : vector<2x256xf32>
    %c1_82 = arith.constant 1 : index
    %c0_83 = arith.constant 0 : index
    %c110_84 = arith.constant 110 : index
    %158 = vector.load %arg8[%c1_82, %c0_83, %c110_84] : memref<2x2x512xf32, #tpu.memory_space<vmem>>, vector<1x2x256xf32>
    %159 = vector.shape_cast %158 : vector<1x2x256xf32> to vector<2x256xf32>
    %160 = vector.broadcast %152 : f32 to vector<2x256xf32>
    %161 = arith.mulf %160, %159 : vector<2x256xf32>
    %162 = arith.addf %157, %161 : vector<2x256xf32>
    %c22 = arith.constant 22 : index
    %163 = memref.load %arg5[%c22] : memref<98xf32, #tpu.memory_space<smem>>
    %c71 = arith.constant 71 : index
    %164 = memref.load %arg5[%c71] : memref<98xf32, #tpu.memory_space<smem>>
    %c0_85 = arith.constant 0 : index
    %c0_86 = arith.constant 0 : index
    %c126 = arith.constant 126 : index
    %165 = vector.load %arg8[%c0_85, %c0_86, %c126] : memref<2x2x512xf32, #tpu.memory_space<vmem>>, vector<1x2x256xf32>
    %166 = vector.shape_cast %165 : vector<1x2x256xf32> to vector<2x256xf32>
    %167 = vector.broadcast %163 : f32 to vector<2x256xf32>
    %168 = arith.mulf %167, %166 : vector<2x256xf32>
    %169 = arith.addf %162, %168 : vector<2x256xf32>
    %c1_87 = arith.constant 1 : index
    %c0_88 = arith.constant 0 : index
    %c126_89 = arith.constant 126 : index
    %170 = vector.load %arg8[%c1_87, %c0_88, %c126_89] : memref<2x2x512xf32, #tpu.memory_space<vmem>>, vector<1x2x256xf32>
    %171 = vector.shape_cast %170 : vector<1x2x256xf32> to vector<2x256xf32>
    %172 = vector.broadcast %164 : f32 to vector<2x256xf32>
    %173 = arith.mulf %172, %171 : vector<2x256xf32>
    %174 = arith.addf %169, %173 : vector<2x256xf32>
    %c29 = arith.constant 29 : index
    %175 = memref.load %arg5[%c29] : memref<98xf32, #tpu.memory_space<smem>>
    %c78_90 = arith.constant 78 : index
    %176 = memref.load %arg5[%c78_90] : memref<98xf32, #tpu.memory_space<smem>>
    %c0_91 = arith.constant 0 : index
    %c0_92 = arith.constant 0 : index
    %c142 = arith.constant 142 : index
    %177 = vector.load %arg8[%c0_91, %c0_92, %c142] : memref<2x2x512xf32, #tpu.memory_space<vmem>>, vector<1x2x256xf32>
    %178 = vector.shape_cast %177 : vector<1x2x256xf32> to vector<2x256xf32>
    %179 = vector.broadcast %175 : f32 to vector<2x256xf32>
    %180 = arith.mulf %179, %178 : vector<2x256xf32>
    %181 = arith.addf %174, %180 : vector<2x256xf32>
    %c1_93 = arith.constant 1 : index
    %c0_94 = arith.constant 0 : index
    %c142_95 = arith.constant 142 : index
    %182 = vector.load %arg8[%c1_93, %c0_94, %c142_95] : memref<2x2x512xf32, #tpu.memory_space<vmem>>, vector<1x2x256xf32>
    %183 = vector.shape_cast %182 : vector<1x2x256xf32> to vector<2x256xf32>
    %184 = vector.broadcast %176 : f32 to vector<2x256xf32>
    %185 = arith.mulf %184, %183 : vector<2x256xf32>
    %186 = arith.addf %181, %185 : vector<2x256xf32>
    %c36 = arith.constant 36 : index
    %187 = memref.load %arg5[%c36] : memref<98xf32, #tpu.memory_space<smem>>
    %c85 = arith.constant 85 : index
    %188 = memref.load %arg5[%c85] : memref<98xf32, #tpu.memory_space<smem>>
    %c0_96 = arith.constant 0 : index
    %c0_97 = arith.constant 0 : index
    %c158 = arith.constant 158 : index
    %189 = vector.load %arg8[%c0_96, %c0_97, %c158] : memref<2x2x512xf32, #tpu.memory_space<vmem>>, vector<1x2x256xf32>
    %190 = vector.shape_cast %189 : vector<1x2x256xf32> to vector<2x256xf32>
    %191 = vector.broadcast %187 : f32 to vector<2x256xf32>
    %192 = arith.mulf %191, %190 : vector<2x256xf32>
    %193 = arith.addf %186, %192 : vector<2x256xf32>
    %c1_98 = arith.constant 1 : index
    %c0_99 = arith.constant 0 : index
    %c158_100 = arith.constant 158 : index
    %194 = vector.load %arg8[%c1_98, %c0_99, %c158_100] : memref<2x2x512xf32, #tpu.memory_space<vmem>>, vector<1x2x256xf32>
    %195 = vector.shape_cast %194 : vector<1x2x256xf32> to vector<2x256xf32>
    %196 = vector.broadcast %188 : f32 to vector<2x256xf32>
    %197 = arith.mulf %196, %195 : vector<2x256xf32>
    %198 = arith.addf %193, %197 : vector<2x256xf32>
    %c43 = arith.constant 43 : index
    %199 = memref.load %arg5[%c43] : memref<98xf32, #tpu.memory_space<smem>>
    %c92 = arith.constant 92 : index
    %200 = memref.load %arg5[%c92] : memref<98xf32, #tpu.memory_space<smem>>
    %c0_101 = arith.constant 0 : index
    %c0_102 = arith.constant 0 : index
    %c174 = arith.constant 174 : index
    %201 = vector.load %arg8[%c0_101, %c0_102, %c174] : memref<2x2x512xf32, #tpu.memory_space<vmem>>, vector<1x2x256xf32>
    %202 = vector.shape_cast %201 : vector<1x2x256xf32> to vector<2x256xf32>
    %203 = vector.broadcast %199 : f32 to vector<2x256xf32>
    %204 = arith.mulf %203, %202 : vector<2x256xf32>
    %205 = arith.addf %198, %204 : vector<2x256xf32>
    %c1_103 = arith.constant 1 : index
    %c0_104 = arith.constant 0 : index
    %c174_105 = arith.constant 174 : index
    %206 = vector.load %arg8[%c1_103, %c0_104, %c174_105] : memref<2x2x512xf32, #tpu.memory_space<vmem>>, vector<1x2x256xf32>
    %207 = vector.shape_cast %206 : vector<1x2x256xf32> to vector<2x256xf32>
    %208 = vector.broadcast %200 : f32 to vector<2x256xf32>
    %209 = arith.mulf %208, %207 : vector<2x256xf32>
    %210 = arith.addf %205, %209 : vector<2x256xf32>
    %c1_106 = arith.constant 1 : index
    %c0_107 = arith.constant 0 : index
    %211 = vector.load %arg4[%c1_106, %c0_107] : memref<7x256xf32, #tpu.memory_space<vmem>>, vector<1x256xf32>
    %212 = vector.broadcast %211 : vector<1x256xf32> to vector<2x256xf32>
    %213 = arith.mulf %212, %210 : vector<2x256xf32>
    %214 = arith.addf %125, %213 : vector<2x256xf32>
    %cst_108 = arith.constant 0.000000e+00 : f32
    %215 = vector.broadcast %cst_108 : f32 to vector<2x256xf32>
    %c2 = arith.constant 2 : index
    %216 = memref.load %arg5[%c2] : memref<98xf32, #tpu.memory_space<smem>>
    %c51 = arith.constant 51 : index
    %217 = memref.load %arg5[%c51] : memref<98xf32, #tpu.memory_space<smem>>
    %c0_109 = arith.constant 0 : index
    %c0_110 = arith.constant 0 : index
    %c79 = arith.constant 79 : index
    %218 = vector.load %arg8[%c0_109, %c0_110, %c79] : memref<2x2x512xf32, #tpu.memory_space<vmem>>, vector<1x2x256xf32>
    %219 = vector.shape_cast %218 : vector<1x2x256xf32> to vector<2x256xf32>
    %220 = vector.broadcast %216 : f32 to vector<2x256xf32>
    %221 = arith.mulf %220, %219 : vector<2x256xf32>
    %222 = arith.addf %215, %221 : vector<2x256xf32>
    %c1_111 = arith.constant 1 : index
    %c0_112 = arith.constant 0 : index
    %c79_113 = arith.constant 79 : index
    %223 = vector.load %arg8[%c1_111, %c0_112, %c79_113] : memref<2x2x512xf32, #tpu.memory_space<vmem>>, vector<1x2x256xf32>
    %224 = vector.shape_cast %223 : vector<1x2x256xf32> to vector<2x256xf32>
    %225 = vector.broadcast %217 : f32 to vector<2x256xf32>
    %226 = arith.mulf %225, %224 : vector<2x256xf32>
    %227 = arith.addf %222, %226 : vector<2x256xf32>
    %c9 = arith.constant 9 : index
    %228 = memref.load %arg5[%c9] : memref<98xf32, #tpu.memory_space<smem>>
    %c58 = arith.constant 58 : index
    %229 = memref.load %arg5[%c58] : memref<98xf32, #tpu.memory_space<smem>>
    %c0_114 = arith.constant 0 : index
    %c0_115 = arith.constant 0 : index
    %c95 = arith.constant 95 : index
    %230 = vector.load %arg8[%c0_114, %c0_115, %c95] : memref<2x2x512xf32, #tpu.memory_space<vmem>>, vector<1x2x256xf32>
    %231 = vector.shape_cast %230 : vector<1x2x256xf32> to vector<2x256xf32>
    %232 = vector.broadcast %228 : f32 to vector<2x256xf32>
    %233 = arith.mulf %232, %231 : vector<2x256xf32>
    %234 = arith.addf %227, %233 : vector<2x256xf32>
    %c1_116 = arith.constant 1 : index
    %c0_117 = arith.constant 0 : index
    %c95_118 = arith.constant 95 : index
    %235 = vector.load %arg8[%c1_116, %c0_117, %c95_118] : memref<2x2x512xf32, #tpu.memory_space<vmem>>, vector<1x2x256xf32>
    %236 = vector.shape_cast %235 : vector<1x2x256xf32> to vector<2x256xf32>
    %237 = vector.broadcast %229 : f32 to vector<2x256xf32>
    %238 = arith.mulf %237, %236 : vector<2x256xf32>
    %239 = arith.addf %234, %238 : vector<2x256xf32>
    %c16 = arith.constant 16 : index
    %240 = memref.load %arg5[%c16] : memref<98xf32, #tpu.memory_space<smem>>
    %c65 = arith.constant 65 : index
    %241 = memref.load %arg5[%c65] : memref<98xf32, #tpu.memory_space<smem>>
    %c0_119 = arith.constant 0 : index
    %c0_120 = arith.constant 0 : index
    %c111 = arith.constant 111 : index
    %242 = vector.load %arg8[%c0_119, %c0_120, %c111] : memref<2x2x512xf32, #tpu.memory_space<vmem>>, vector<1x2x256xf32>
    %243 = vector.shape_cast %242 : vector<1x2x256xf32> to vector<2x256xf32>
    %244 = vector.broadcast %240 : f32 to vector<2x256xf32>
    %245 = arith.mulf %244, %243 : vector<2x256xf32>
    %246 = arith.addf %239, %245 : vector<2x256xf32>
    %c1_121 = arith.constant 1 : index
    %c0_122 = arith.constant 0 : index
    %c111_123 = arith.constant 111 : index
    %247 = vector.load %arg8[%c1_121, %c0_122, %c111_123] : memref<2x2x512xf32, #tpu.memory_space<vmem>>, vector<1x2x256xf32>
    %248 = vector.shape_cast %247 : vector<1x2x256xf32> to vector<2x256xf32>
    %249 = vector.broadcast %241 : f32 to vector<2x256xf32>
    %250 = arith.mulf %249, %248 : vector<2x256xf32>
    %251 = arith.addf %246, %250 : vector<2x256xf32>
    %c23 = arith.constant 23 : index
    %252 = memref.load %arg5[%c23] : memref<98xf32, #tpu.memory_space<smem>>
    %c72 = arith.constant 72 : index
    %253 = memref.load %arg5[%c72] : memref<98xf32, #tpu.memory_space<smem>>
    %c0_124 = arith.constant 0 : index
    %c0_125 = arith.constant 0 : index
    %c127 = arith.constant 127 : index
    %254 = vector.load %arg8[%c0_124, %c0_125, %c127] : memref<2x2x512xf32, #tpu.memory_space<vmem>>, vector<1x2x256xf32>
    %255 = vector.shape_cast %254 : vector<1x2x256xf32> to vector<2x256xf32>
    %256 = vector.broadcast %252 : f32 to vector<2x256xf32>
    %257 = arith.mulf %256, %255 : vector<2x256xf32>
    %258 = arith.addf %251, %257 : vector<2x256xf32>
    %c1_126 = arith.constant 1 : index
    %c0_127 = arith.constant 0 : index
    %c127_128 = arith.constant 127 : index
    %259 = vector.load %arg8[%c1_126, %c0_127, %c127_128] : memref<2x2x512xf32, #tpu.memory_space<vmem>>, vector<1x2x256xf32>
    %260 = vector.shape_cast %259 : vector<1x2x256xf32> to vector<2x256xf32>
    %261 = vector.broadcast %253 : f32 to vector<2x256xf32>
    %262 = arith.mulf %261, %260 : vector<2x256xf32>
    %263 = arith.addf %258, %262 : vector<2x256xf32>
    %c30 = arith.constant 30 : index
    %264 = memref.load %arg5[%c30] : memref<98xf32, #tpu.memory_space<smem>>
    %c79_129 = arith.constant 79 : index
    %265 = memref.load %arg5[%c79_129] : memref<98xf32, #tpu.memory_space<smem>>
    %c0_130 = arith.constant 0 : index
    %c0_131 = arith.constant 0 : index
    %c143 = arith.constant 143 : index
    %266 = vector.load %arg8[%c0_130, %c0_131, %c143] : memref<2x2x512xf32, #tpu.memory_space<vmem>>, vector<1x2x256xf32>
    %267 = vector.shape_cast %266 : vector<1x2x256xf32> to vector<2x256xf32>
    %268 = vector.broadcast %264 : f32 to vector<2x256xf32>
    %269 = arith.mulf %268, %267 : vector<2x256xf32>
    %270 = arith.addf %263, %269 : vector<2x256xf32>
    %c1_132 = arith.constant 1 : index
    %c0_133 = arith.constant 0 : index
    %c143_134 = arith.constant 143 : index
    %271 = vector.load %arg8[%c1_132, %c0_133, %c143_134] : memref<2x2x512xf32, #tpu.memory_space<vmem>>, vector<1x2x256xf32>
    %272 = vector.shape_cast %271 : vector<1x2x256xf32> to vector<2x256xf32>
    %273 = vector.broadcast %265 : f32 to vector<2x256xf32>
    %274 = arith.mulf %273, %272 : vector<2x256xf32>
    %275 = arith.addf %270, %274 : vector<2x256xf32>
    %c37 = arith.constant 37 : index
    %276 = memref.load %arg5[%c37] : memref<98xf32, #tpu.memory_space<smem>>
    %c86 = arith.constant 86 : index
    %277 = memref.load %arg5[%c86] : memref<98xf32, #tpu.memory_space<smem>>
    %c0_135 = arith.constant 0 : index
    %c0_136 = arith.constant 0 : index
    %c159 = arith.constant 159 : index
    %278 = vector.load %arg8[%c0_135, %c0_136, %c159] : memref<2x2x512xf32, #tpu.memory_space<vmem>>, vector<1x2x256xf32>
    %279 = vector.shape_cast %278 : vector<1x2x256xf32> to vector<2x256xf32>
    %280 = vector.broadcast %276 : f32 to vector<2x256xf32>
    %281 = arith.mulf %280, %279 : vector<2x256xf32>
    %282 = arith.addf %275, %281 : vector<2x256xf32>
    %c1_137 = arith.constant 1 : index
    %c0_138 = arith.constant 0 : index
    %c159_139 = arith.constant 159 : index
    %283 = vector.load %arg8[%c1_137, %c0_138, %c159_139] : memref<2x2x512xf32, #tpu.memory_space<vmem>>, vector<1x2x256xf32>
    %284 = vector.shape_cast %283 : vector<1x2x256xf32> to vector<2x256xf32>
    %285 = vector.broadcast %277 : f32 to vector<2x256xf32>
    %286 = arith.mulf %285, %284 : vector<2x256xf32>
    %287 = arith.addf %282, %286 : vector<2x256xf32>
    %c44 = arith.constant 44 : index
    %288 = memref.load %arg5[%c44] : memref<98xf32, #tpu.memory_space<smem>>
    %c93_140 = arith.constant 93 : index
    %289 = memref.load %arg5[%c93_140] : memref<98xf32, #tpu.memory_space<smem>>
    %c0_141 = arith.constant 0 : index
    %c0_142 = arith.constant 0 : index
    %c175 = arith.constant 175 : index
    %290 = vector.load %arg8[%c0_141, %c0_142, %c175] : memref<2x2x512xf32, #tpu.memory_space<vmem>>, vector<1x2x256xf32>
    %291 = vector.shape_cast %290 : vector<1x2x256xf32> to vector<2x256xf32>
    %292 = vector.broadcast %288 : f32 to vector<2x256xf32>
    %293 = arith.mulf %292, %291 : vector<2x256xf32>
    %294 = arith.addf %287, %293 : vector<2x256xf32>
    %c1_143 = arith.constant 1 : index
    %c0_144 = arith.constant 0 : index
    %c175_145 = arith.constant 175 : index
    %295 = vector.load %arg8[%c1_143, %c0_144, %c175_145] : memref<2x2x512xf32, #tpu.memory_space<vmem>>, vector<1x2x256xf32>
    %296 = vector.shape_cast %295 : vector<1x2x256xf32> to vector<2x256xf32>
    %297 = vector.broadcast %289 : f32 to vector<2x256xf32>
    %298 = arith.mulf %297, %296 : vector<2x256xf32>
    %299 = arith.addf %294, %298 : vector<2x256xf32>
    %c2_146 = arith.constant 2 : index
    %c0_147 = arith.constant 0 : index
    %300 = vector.load %arg4[%c2_146, %c0_147] : memref<7x256xf32, #tpu.memory_space<vmem>>, vector<1x256xf32>
    %301 = vector.broadcast %300 : vector<1x256xf32> to vector<2x256xf32>
    %302 = arith.mulf %301, %299 : vector<2x256xf32>
    %303 = arith.addf %214, %302 : vector<2x256xf32>
    %cst_148 = arith.constant 0.000000e+00 : f32
    %304 = vector.broadcast %cst_148 : f32 to vector<2x256xf32>
    %c3 = arith.constant 3 : index
    %305 = memref.load %arg5[%c3] : memref<98xf32, #tpu.memory_space<smem>>
    %c52 = arith.constant 52 : index
    %306 = memref.load %arg5[%c52] : memref<98xf32, #tpu.memory_space<smem>>
    %c0_149 = arith.constant 0 : index
    %c0_150 = arith.constant 0 : index
    %c80 = arith.constant 80 : index
    %307 = vector.load %arg8[%c0_149, %c0_150, %c80] : memref<2x2x512xf32, #tpu.memory_space<vmem>>, vector<1x2x256xf32>
    %308 = vector.shape_cast %307 : vector<1x2x256xf32> to vector<2x256xf32>
    %309 = vector.broadcast %305 : f32 to vector<2x256xf32>
    %310 = arith.mulf %309, %308 : vector<2x256xf32>
    %311 = arith.addf %304, %310 : vector<2x256xf32>
    %c1_151 = arith.constant 1 : index
    %c0_152 = arith.constant 0 : index
    %c80_153 = arith.constant 80 : index
    %312 = vector.load %arg8[%c1_151, %c0_152, %c80_153] : memref<2x2x512xf32, #tpu.memory_space<vmem>>, vector<1x2x256xf32>
    %313 = vector.shape_cast %312 : vector<1x2x256xf32> to vector<2x256xf32>
    %314 = vector.broadcast %306 : f32 to vector<2x256xf32>
    %315 = arith.mulf %314, %313 : vector<2x256xf32>
    %316 = arith.addf %311, %315 : vector<2x256xf32>
    %c10 = arith.constant 10 : index
    %317 = memref.load %arg5[%c10] : memref<98xf32, #tpu.memory_space<smem>>
    %c59 = arith.constant 59 : index
    %318 = memref.load %arg5[%c59] : memref<98xf32, #tpu.memory_space<smem>>
    %c0_154 = arith.constant 0 : index
    %c0_155 = arith.constant 0 : index
    %c96 = arith.constant 96 : index
    %319 = vector.load %arg8[%c0_154, %c0_155, %c96] : memref<2x2x512xf32, #tpu.memory_space<vmem>>, vector<1x2x256xf32>
    %320 = vector.shape_cast %319 : vector<1x2x256xf32> to vector<2x256xf32>
    %321 = vector.broadcast %317 : f32 to vector<2x256xf32>
    %322 = arith.mulf %321, %320 : vector<2x256xf32>
    %323 = arith.addf %316, %322 : vector<2x256xf32>
    %c1_156 = arith.constant 1 : index
    %c0_157 = arith.constant 0 : index
    %c96_158 = arith.constant 96 : index
    %324 = vector.load %arg8[%c1_156, %c0_157, %c96_158] : memref<2x2x512xf32, #tpu.memory_space<vmem>>, vector<1x2x256xf32>
    %325 = vector.shape_cast %324 : vector<1x2x256xf32> to vector<2x256xf32>
    %326 = vector.broadcast %318 : f32 to vector<2x256xf32>
    %327 = arith.mulf %326, %325 : vector<2x256xf32>
    %328 = arith.addf %323, %327 : vector<2x256xf32>
    %c17 = arith.constant 17 : index
    %329 = memref.load %arg5[%c17] : memref<98xf32, #tpu.memory_space<smem>>
    %c66 = arith.constant 66 : index
    %330 = memref.load %arg5[%c66] : memref<98xf32, #tpu.memory_space<smem>>
    %c0_159 = arith.constant 0 : index
    %c0_160 = arith.constant 0 : index
    %c112 = arith.constant 112 : index
    %331 = vector.load %arg8[%c0_159, %c0_160, %c112] : memref<2x2x512xf32, #tpu.memory_space<vmem>>, vector<1x2x256xf32>
    %332 = vector.shape_cast %331 : vector<1x2x256xf32> to vector<2x256xf32>
    %333 = vector.broadcast %329 : f32 to vector<2x256xf32>
    %334 = arith.mulf %333, %332 : vector<2x256xf32>
    %335 = arith.addf %328, %334 : vector<2x256xf32>
    %c1_161 = arith.constant 1 : index
    %c0_162 = arith.constant 0 : index
    %c112_163 = arith.constant 112 : index
    %336 = vector.load %arg8[%c1_161, %c0_162, %c112_163] : memref<2x2x512xf32, #tpu.memory_space<vmem>>, vector<1x2x256xf32>
    %337 = vector.shape_cast %336 : vector<1x2x256xf32> to vector<2x256xf32>
    %338 = vector.broadcast %330 : f32 to vector<2x256xf32>
    %339 = arith.mulf %338, %337 : vector<2x256xf32>
    %340 = arith.addf %335, %339 : vector<2x256xf32>
    %c24 = arith.constant 24 : index
    %341 = memref.load %arg5[%c24] : memref<98xf32, #tpu.memory_space<smem>>
    %c73 = arith.constant 73 : index
    %342 = memref.load %arg5[%c73] : memref<98xf32, #tpu.memory_space<smem>>
    %c0_164 = arith.constant 0 : index
    %c0_165 = arith.constant 0 : index
    %c128_166 = arith.constant 128 : index
    %343 = vector.load %arg8[%c0_164, %c0_165, %c128_166] : memref<2x2x512xf32, #tpu.memory_space<vmem>>, vector<1x2x256xf32>
    %344 = vector.shape_cast %343 : vector<1x2x256xf32> to vector<2x256xf32>
    %345 = vector.broadcast %341 : f32 to vector<2x256xf32>
    %346 = arith.mulf %345, %344 : vector<2x256xf32>
    %347 = arith.addf %340, %346 : vector<2x256xf32>
    %c1_167 = arith.constant 1 : index
    %c0_168 = arith.constant 0 : index
    %c128_169 = arith.constant 128 : index
    %348 = vector.load %arg8[%c1_167, %c0_168, %c128_169] : memref<2x2x512xf32, #tpu.memory_space<vmem>>, vector<1x2x256xf32>
    %349 = vector.shape_cast %348 : vector<1x2x256xf32> to vector<2x256xf32>
    %350 = vector.broadcast %342 : f32 to vector<2x256xf32>
    %351 = arith.mulf %350, %349 : vector<2x256xf32>
    %352 = arith.addf %347, %351 : vector<2x256xf32>
    %c31 = arith.constant 31 : index
    %353 = memref.load %arg5[%c31] : memref<98xf32, #tpu.memory_space<smem>>
    %c80_170 = arith.constant 80 : index
    %354 = memref.load %arg5[%c80_170] : memref<98xf32, #tpu.memory_space<smem>>
    %c0_171 = arith.constant 0 : index
    %c0_172 = arith.constant 0 : index
    %c144 = arith.constant 144 : index
    %355 = vector.load %arg8[%c0_171, %c0_172, %c144] : memref<2x2x512xf32, #tpu.memory_space<vmem>>, vector<1x2x256xf32>
    %356 = vector.shape_cast %355 : vector<1x2x256xf32> to vector<2x256xf32>
    %357 = vector.broadcast %353 : f32 to vector<2x256xf32>
    %358 = arith.mulf %357, %356 : vector<2x256xf32>
    %359 = arith.addf %352, %358 : vector<2x256xf32>
    %c1_173 = arith.constant 1 : index
    %c0_174 = arith.constant 0 : index
    %c144_175 = arith.constant 144 : index
    %360 = vector.load %arg8[%c1_173, %c0_174, %c144_175] : memref<2x2x512xf32, #tpu.memory_space<vmem>>, vector<1x2x256xf32>
    %361 = vector.shape_cast %360 : vector<1x2x256xf32> to vector<2x256xf32>
    %362 = vector.broadcast %354 : f32 to vector<2x256xf32>
    %363 = arith.mulf %362, %361 : vector<2x256xf32>
    %364 = arith.addf %359, %363 : vector<2x256xf32>
    %c38 = arith.constant 38 : index
    %365 = memref.load %arg5[%c38] : memref<98xf32, #tpu.memory_space<smem>>
    %c87 = arith.constant 87 : index
    %366 = memref.load %arg5[%c87] : memref<98xf32, #tpu.memory_space<smem>>
    %c0_176 = arith.constant 0 : index
    %c0_177 = arith.constant 0 : index
    %c160 = arith.constant 160 : index
    %367 = vector.load %arg8[%c0_176, %c0_177, %c160] : memref<2x2x512xf32, #tpu.memory_space<vmem>>, vector<1x2x256xf32>
    %368 = vector.shape_cast %367 : vector<1x2x256xf32> to vector<2x256xf32>
    %369 = vector.broadcast %365 : f32 to vector<2x256xf32>
    %370 = arith.mulf %369, %368 : vector<2x256xf32>
    %371 = arith.addf %364, %370 : vector<2x256xf32>
    %c1_178 = arith.constant 1 : index
    %c0_179 = arith.constant 0 : index
    %c160_180 = arith.constant 160 : index
    %372 = vector.load %arg8[%c1_178, %c0_179, %c160_180] : memref<2x2x512xf32, #tpu.memory_space<vmem>>, vector<1x2x256xf32>
    %373 = vector.shape_cast %372 : vector<1x2x256xf32> to vector<2x256xf32>
    %374 = vector.broadcast %366 : f32 to vector<2x256xf32>
    %375 = arith.mulf %374, %373 : vector<2x256xf32>
    %376 = arith.addf %371, %375 : vector<2x256xf32>
    %c45 = arith.constant 45 : index
    %377 = memref.load %arg5[%c45] : memref<98xf32, #tpu.memory_space<smem>>
    %c94_181 = arith.constant 94 : index
    %378 = memref.load %arg5[%c94_181] : memref<98xf32, #tpu.memory_space<smem>>
    %c0_182 = arith.constant 0 : index
    %c0_183 = arith.constant 0 : index
    %c176 = arith.constant 176 : index
    %379 = vector.load %arg8[%c0_182, %c0_183, %c176] : memref<2x2x512xf32, #tpu.memory_space<vmem>>, vector<1x2x256xf32>
    %380 = vector.shape_cast %379 : vector<1x2x256xf32> to vector<2x256xf32>
    %381 = vector.broadcast %377 : f32 to vector<2x256xf32>
    %382 = arith.mulf %381, %380 : vector<2x256xf32>
    %383 = arith.addf %376, %382 : vector<2x256xf32>
    %c1_184 = arith.constant 1 : index
    %c0_185 = arith.constant 0 : index
    %c176_186 = arith.constant 176 : index
    %384 = vector.load %arg8[%c1_184, %c0_185, %c176_186] : memref<2x2x512xf32, #tpu.memory_space<vmem>>, vector<1x2x256xf32>
    %385 = vector.shape_cast %384 : vector<1x2x256xf32> to vector<2x256xf32>
    %386 = vector.broadcast %378 : f32 to vector<2x256xf32>
    %387 = arith.mulf %386, %385 : vector<2x256xf32>
    %388 = arith.addf %383, %387 : vector<2x256xf32>
    %c3_187 = arith.constant 3 : index
    %c0_188 = arith.constant 0 : index
    %389 = vector.load %arg4[%c3_187, %c0_188] : memref<7x256xf32, #tpu.memory_space<vmem>>, vector<1x256xf32>
    %390 = vector.broadcast %389 : vector<1x256xf32> to vector<2x256xf32>
    %391 = arith.mulf %390, %388 : vector<2x256xf32>
    %392 = arith.addf %303, %391 : vector<2x256xf32>
    %cst_189 = arith.constant 0.000000e+00 : f32
    %393 = vector.broadcast %cst_189 : f32 to vector<2x256xf32>
    %c4 = arith.constant 4 : index
    %394 = memref.load %arg5[%c4] : memref<98xf32, #tpu.memory_space<smem>>
    %c53 = arith.constant 53 : index
    %395 = memref.load %arg5[%c53] : memref<98xf32, #tpu.memory_space<smem>>
    %c0_190 = arith.constant 0 : index
    %c0_191 = arith.constant 0 : index
    %c81 = arith.constant 81 : index
    %396 = vector.load %arg8[%c0_190, %c0_191, %c81] : memref<2x2x512xf32, #tpu.memory_space<vmem>>, vector<1x2x256xf32>
    %397 = vector.shape_cast %396 : vector<1x2x256xf32> to vector<2x256xf32>
    %398 = vector.broadcast %394 : f32 to vector<2x256xf32>
    %399 = arith.mulf %398, %397 : vector<2x256xf32>
    %400 = arith.addf %393, %399 : vector<2x256xf32>
    %c1_192 = arith.constant 1 : index
    %c0_193 = arith.constant 0 : index
    %c81_194 = arith.constant 81 : index
    %401 = vector.load %arg8[%c1_192, %c0_193, %c81_194] : memref<2x2x512xf32, #tpu.memory_space<vmem>>, vector<1x2x256xf32>
    %402 = vector.shape_cast %401 : vector<1x2x256xf32> to vector<2x256xf32>
    %403 = vector.broadcast %395 : f32 to vector<2x256xf32>
    %404 = arith.mulf %403, %402 : vector<2x256xf32>
    %405 = arith.addf %400, %404 : vector<2x256xf32>
    %c11 = arith.constant 11 : index
    %406 = memref.load %arg5[%c11] : memref<98xf32, #tpu.memory_space<smem>>
    %c60 = arith.constant 60 : index
    %407 = memref.load %arg5[%c60] : memref<98xf32, #tpu.memory_space<smem>>
    %c0_195 = arith.constant 0 : index
    %c0_196 = arith.constant 0 : index
    %c97 = arith.constant 97 : index
    %408 = vector.load %arg8[%c0_195, %c0_196, %c97] : memref<2x2x512xf32, #tpu.memory_space<vmem>>, vector<1x2x256xf32>
    %409 = vector.shape_cast %408 : vector<1x2x256xf32> to vector<2x256xf32>
    %410 = vector.broadcast %406 : f32 to vector<2x256xf32>
    %411 = arith.mulf %410, %409 : vector<2x256xf32>
    %412 = arith.addf %405, %411 : vector<2x256xf32>
    %c1_197 = arith.constant 1 : index
    %c0_198 = arith.constant 0 : index
    %c97_199 = arith.constant 97 : index
    %413 = vector.load %arg8[%c1_197, %c0_198, %c97_199] : memref<2x2x512xf32, #tpu.memory_space<vmem>>, vector<1x2x256xf32>
    %414 = vector.shape_cast %413 : vector<1x2x256xf32> to vector<2x256xf32>
    %415 = vector.broadcast %407 : f32 to vector<2x256xf32>
    %416 = arith.mulf %415, %414 : vector<2x256xf32>
    %417 = arith.addf %412, %416 : vector<2x256xf32>
    %c18 = arith.constant 18 : index
    %418 = memref.load %arg5[%c18] : memref<98xf32, #tpu.memory_space<smem>>
    %c67 = arith.constant 67 : index
    %419 = memref.load %arg5[%c67] : memref<98xf32, #tpu.memory_space<smem>>
    %c0_200 = arith.constant 0 : index
    %c0_201 = arith.constant 0 : index
    %c113 = arith.constant 113 : index
    %420 = vector.load %arg8[%c0_200, %c0_201, %c113] : memref<2x2x512xf32, #tpu.memory_space<vmem>>, vector<1x2x256xf32>
    %421 = vector.shape_cast %420 : vector<1x2x256xf32> to vector<2x256xf32>
    %422 = vector.broadcast %418 : f32 to vector<2x256xf32>
    %423 = arith.mulf %422, %421 : vector<2x256xf32>
    %424 = arith.addf %417, %423 : vector<2x256xf32>
    %c1_202 = arith.constant 1 : index
    %c0_203 = arith.constant 0 : index
    %c113_204 = arith.constant 113 : index
    %425 = vector.load %arg8[%c1_202, %c0_203, %c113_204] : memref<2x2x512xf32, #tpu.memory_space<vmem>>, vector<1x2x256xf32>
    %426 = vector.shape_cast %425 : vector<1x2x256xf32> to vector<2x256xf32>
    %427 = vector.broadcast %419 : f32 to vector<2x256xf32>
    %428 = arith.mulf %427, %426 : vector<2x256xf32>
    %429 = arith.addf %424, %428 : vector<2x256xf32>
    %c25 = arith.constant 25 : index
    %430 = memref.load %arg5[%c25] : memref<98xf32, #tpu.memory_space<smem>>
    %c74 = arith.constant 74 : index
    %431 = memref.load %arg5[%c74] : memref<98xf32, #tpu.memory_space<smem>>
    %c0_205 = arith.constant 0 : index
    %c0_206 = arith.constant 0 : index
    %c129 = arith.constant 129 : index
    %432 = vector.load %arg8[%c0_205, %c0_206, %c129] : memref<2x2x512xf32, #tpu.memory_space<vmem>>, vector<1x2x256xf32>
    %433 = vector.shape_cast %432 : vector<1x2x256xf32> to vector<2x256xf32>
    %434 = vector.broadcast %430 : f32 to vector<2x256xf32>
    %435 = arith.mulf %434, %433 : vector<2x256xf32>
    %436 = arith.addf %429, %435 : vector<2x256xf32>
    %c1_207 = arith.constant 1 : index
    %c0_208 = arith.constant 0 : index
    %c129_209 = arith.constant 129 : index
    %437 = vector.load %arg8[%c1_207, %c0_208, %c129_209] : memref<2x2x512xf32, #tpu.memory_space<vmem>>, vector<1x2x256xf32>
    %438 = vector.shape_cast %437 : vector<1x2x256xf32> to vector<2x256xf32>
    %439 = vector.broadcast %431 : f32 to vector<2x256xf32>
    %440 = arith.mulf %439, %438 : vector<2x256xf32>
    %441 = arith.addf %436, %440 : vector<2x256xf32>
    %c32 = arith.constant 32 : index
    %442 = memref.load %arg5[%c32] : memref<98xf32, #tpu.memory_space<smem>>
    %c81_210 = arith.constant 81 : index
    %443 = memref.load %arg5[%c81_210] : memref<98xf32, #tpu.memory_space<smem>>
    %c0_211 = arith.constant 0 : index
    %c0_212 = arith.constant 0 : index
    %c145 = arith.constant 145 : index
    %444 = vector.load %arg8[%c0_211, %c0_212, %c145] : memref<2x2x512xf32, #tpu.memory_space<vmem>>, vector<1x2x256xf32>
    %445 = vector.shape_cast %444 : vector<1x2x256xf32> to vector<2x256xf32>
    %446 = vector.broadcast %442 : f32 to vector<2x256xf32>
    %447 = arith.mulf %446, %445 : vector<2x256xf32>
    %448 = arith.addf %441, %447 : vector<2x256xf32>
    %c1_213 = arith.constant 1 : index
    %c0_214 = arith.constant 0 : index
    %c145_215 = arith.constant 145 : index
    %449 = vector.load %arg8[%c1_213, %c0_214, %c145_215] : memref<2x2x512xf32, #tpu.memory_space<vmem>>, vector<1x2x256xf32>
    %450 = vector.shape_cast %449 : vector<1x2x256xf32> to vector<2x256xf32>
    %451 = vector.broadcast %443 : f32 to vector<2x256xf32>
    %452 = arith.mulf %451, %450 : vector<2x256xf32>
    %453 = arith.addf %448, %452 : vector<2x256xf32>
    %c39 = arith.constant 39 : index
    %454 = memref.load %arg5[%c39] : memref<98xf32, #tpu.memory_space<smem>>
    %c88 = arith.constant 88 : index
    %455 = memref.load %arg5[%c88] : memref<98xf32, #tpu.memory_space<smem>>
    %c0_216 = arith.constant 0 : index
    %c0_217 = arith.constant 0 : index
    %c161 = arith.constant 161 : index
    %456 = vector.load %arg8[%c0_216, %c0_217, %c161] : memref<2x2x512xf32, #tpu.memory_space<vmem>>, vector<1x2x256xf32>
    %457 = vector.shape_cast %456 : vector<1x2x256xf32> to vector<2x256xf32>
    %458 = vector.broadcast %454 : f32 to vector<2x256xf32>
    %459 = arith.mulf %458, %457 : vector<2x256xf32>
    %460 = arith.addf %453, %459 : vector<2x256xf32>
    %c1_218 = arith.constant 1 : index
    %c0_219 = arith.constant 0 : index
    %c161_220 = arith.constant 161 : index
    %461 = vector.load %arg8[%c1_218, %c0_219, %c161_220] : memref<2x2x512xf32, #tpu.memory_space<vmem>>, vector<1x2x256xf32>
    %462 = vector.shape_cast %461 : vector<1x2x256xf32> to vector<2x256xf32>
    %463 = vector.broadcast %455 : f32 to vector<2x256xf32>
    %464 = arith.mulf %463, %462 : vector<2x256xf32>
    %465 = arith.addf %460, %464 : vector<2x256xf32>
    %c46 = arith.constant 46 : index
    %466 = memref.load %arg5[%c46] : memref<98xf32, #tpu.memory_space<smem>>
    %c95_221 = arith.constant 95 : index
    %467 = memref.load %arg5[%c95_221] : memref<98xf32, #tpu.memory_space<smem>>
    %c0_222 = arith.constant 0 : index
    %c0_223 = arith.constant 0 : index
    %c177 = arith.constant 177 : index
    %468 = vector.load %arg8[%c0_222, %c0_223, %c177] : memref<2x2x512xf32, #tpu.memory_space<vmem>>, vector<1x2x256xf32>
    %469 = vector.shape_cast %468 : vector<1x2x256xf32> to vector<2x256xf32>
    %470 = vector.broadcast %466 : f32 to vector<2x256xf32>
    %471 = arith.mulf %470, %469 : vector<2x256xf32>
    %472 = arith.addf %465, %471 : vector<2x256xf32>
    %c1_224 = arith.constant 1 : index
    %c0_225 = arith.constant 0 : index
    %c177_226 = arith.constant 177 : index
    %473 = vector.load %arg8[%c1_224, %c0_225, %c177_226] : memref<2x2x512xf32, #tpu.memory_space<vmem>>, vector<1x2x256xf32>
    %474 = vector.shape_cast %473 : vector<1x2x256xf32> to vector<2x256xf32>
    %475 = vector.broadcast %467 : f32 to vector<2x256xf32>
    %476 = arith.mulf %475, %474 : vector<2x256xf32>
    %477 = arith.addf %472, %476 : vector<2x256xf32>
    %c4_227 = arith.constant 4 : index
    %c0_228 = arith.constant 0 : index
    %478 = vector.load %arg4[%c4_227, %c0_228] : memref<7x256xf32, #tpu.memory_space<vmem>>, vector<1x256xf32>
    %479 = vector.broadcast %478 : vector<1x256xf32> to vector<2x256xf32>
    %480 = arith.mulf %479, %477 : vector<2x256xf32>
    %481 = arith.addf %392, %480 : vector<2x256xf32>
    %cst_229 = arith.constant 0.000000e+00 : f32
    %482 = vector.broadcast %cst_229 : f32 to vector<2x256xf32>
    %c5 = arith.constant 5 : index
    %483 = memref.load %arg5[%c5] : memref<98xf32, #tpu.memory_space<smem>>
    %c54 = arith.constant 54 : index
    %484 = memref.load %arg5[%c54] : memref<98xf32, #tpu.memory_space<smem>>
    %c0_230 = arith.constant 0 : index
    %c0_231 = arith.constant 0 : index
    %c82 = arith.constant 82 : index
    %485 = vector.load %arg8[%c0_230, %c0_231, %c82] : memref<2x2x512xf32, #tpu.memory_space<vmem>>, vector<1x2x256xf32>
    %486 = vector.shape_cast %485 : vector<1x2x256xf32> to vector<2x256xf32>
    %487 = vector.broadcast %483 : f32 to vector<2x256xf32>
    %488 = arith.mulf %487, %486 : vector<2x256xf32>
    %489 = arith.addf %482, %488 : vector<2x256xf32>
    %c1_232 = arith.constant 1 : index
    %c0_233 = arith.constant 0 : index
    %c82_234 = arith.constant 82 : index
    %490 = vector.load %arg8[%c1_232, %c0_233, %c82_234] : memref<2x2x512xf32, #tpu.memory_space<vmem>>, vector<1x2x256xf32>
    %491 = vector.shape_cast %490 : vector<1x2x256xf32> to vector<2x256xf32>
    %492 = vector.broadcast %484 : f32 to vector<2x256xf32>
    %493 = arith.mulf %492, %491 : vector<2x256xf32>
    %494 = arith.addf %489, %493 : vector<2x256xf32>
    %c12 = arith.constant 12 : index
    %495 = memref.load %arg5[%c12] : memref<98xf32, #tpu.memory_space<smem>>
    %c61 = arith.constant 61 : index
    %496 = memref.load %arg5[%c61] : memref<98xf32, #tpu.memory_space<smem>>
    %c0_235 = arith.constant 0 : index
    %c0_236 = arith.constant 0 : index
    %c98 = arith.constant 98 : index
    %497 = vector.load %arg8[%c0_235, %c0_236, %c98] : memref<2x2x512xf32, #tpu.memory_space<vmem>>, vector<1x2x256xf32>
    %498 = vector.shape_cast %497 : vector<1x2x256xf32> to vector<2x256xf32>
    %499 = vector.broadcast %495 : f32 to vector<2x256xf32>
    %500 = arith.mulf %499, %498 : vector<2x256xf32>
    %501 = arith.addf %494, %500 : vector<2x256xf32>
    %c1_237 = arith.constant 1 : index
    %c0_238 = arith.constant 0 : index
    %c98_239 = arith.constant 98 : index
    %502 = vector.load %arg8[%c1_237, %c0_238, %c98_239] : memref<2x2x512xf32, #tpu.memory_space<vmem>>, vector<1x2x256xf32>
    %503 = vector.shape_cast %502 : vector<1x2x256xf32> to vector<2x256xf32>
    %504 = vector.broadcast %496 : f32 to vector<2x256xf32>
    %505 = arith.mulf %504, %503 : vector<2x256xf32>
    %506 = arith.addf %501, %505 : vector<2x256xf32>
    %c19 = arith.constant 19 : index
    %507 = memref.load %arg5[%c19] : memref<98xf32, #tpu.memory_space<smem>>
    %c68 = arith.constant 68 : index
    %508 = memref.load %arg5[%c68] : memref<98xf32, #tpu.memory_space<smem>>
    %c0_240 = arith.constant 0 : index
    %c0_241 = arith.constant 0 : index
    %c114 = arith.constant 114 : index
    %509 = vector.load %arg8[%c0_240, %c0_241, %c114] : memref<2x2x512xf32, #tpu.memory_space<vmem>>, vector<1x2x256xf32>
    %510 = vector.shape_cast %509 : vector<1x2x256xf32> to vector<2x256xf32>
    %511 = vector.broadcast %507 : f32 to vector<2x256xf32>
    %512 = arith.mulf %511, %510 : vector<2x256xf32>
    %513 = arith.addf %506, %512 : vector<2x256xf32>
    %c1_242 = arith.constant 1 : index
    %c0_243 = arith.constant 0 : index
    %c114_244 = arith.constant 114 : index
    %514 = vector.load %arg8[%c1_242, %c0_243, %c114_244] : memref<2x2x512xf32, #tpu.memory_space<vmem>>, vector<1x2x256xf32>
    %515 = vector.shape_cast %514 : vector<1x2x256xf32> to vector<2x256xf32>
    %516 = vector.broadcast %508 : f32 to vector<2x256xf32>
    %517 = arith.mulf %516, %515 : vector<2x256xf32>
    %518 = arith.addf %513, %517 : vector<2x256xf32>
    %c26 = arith.constant 26 : index
    %519 = memref.load %arg5[%c26] : memref<98xf32, #tpu.memory_space<smem>>
    %c75 = arith.constant 75 : index
    %520 = memref.load %arg5[%c75] : memref<98xf32, #tpu.memory_space<smem>>
    %c0_245 = arith.constant 0 : index
    %c0_246 = arith.constant 0 : index
    %c130 = arith.constant 130 : index
    %521 = vector.load %arg8[%c0_245, %c0_246, %c130] : memref<2x2x512xf32, #tpu.memory_space<vmem>>, vector<1x2x256xf32>
    %522 = vector.shape_cast %521 : vector<1x2x256xf32> to vector<2x256xf32>
    %523 = vector.broadcast %519 : f32 to vector<2x256xf32>
    %524 = arith.mulf %523, %522 : vector<2x256xf32>
    %525 = arith.addf %518, %524 : vector<2x256xf32>
    %c1_247 = arith.constant 1 : index
    %c0_248 = arith.constant 0 : index
    %c130_249 = arith.constant 130 : index
    %526 = vector.load %arg8[%c1_247, %c0_248, %c130_249] : memref<2x2x512xf32, #tpu.memory_space<vmem>>, vector<1x2x256xf32>
    %527 = vector.shape_cast %526 : vector<1x2x256xf32> to vector<2x256xf32>
    %528 = vector.broadcast %520 : f32 to vector<2x256xf32>
    %529 = arith.mulf %528, %527 : vector<2x256xf32>
    %530 = arith.addf %525, %529 : vector<2x256xf32>
    %c33 = arith.constant 33 : index
    %531 = memref.load %arg5[%c33] : memref<98xf32, #tpu.memory_space<smem>>
    %c82_250 = arith.constant 82 : index
    %532 = memref.load %arg5[%c82_250] : memref<98xf32, #tpu.memory_space<smem>>
    %c0_251 = arith.constant 0 : index
    %c0_252 = arith.constant 0 : index
    %c146 = arith.constant 146 : index
    %533 = vector.load %arg8[%c0_251, %c0_252, %c146] : memref<2x2x512xf32, #tpu.memory_space<vmem>>, vector<1x2x256xf32>
    %534 = vector.shape_cast %533 : vector<1x2x256xf32> to vector<2x256xf32>
    %535 = vector.broadcast %531 : f32 to vector<2x256xf32>
    %536 = arith.mulf %535, %534 : vector<2x256xf32>
    %537 = arith.addf %530, %536 : vector<2x256xf32>
    %c1_253 = arith.constant 1 : index
    %c0_254 = arith.constant 0 : index
    %c146_255 = arith.constant 146 : index
    %538 = vector.load %arg8[%c1_253, %c0_254, %c146_255] : memref<2x2x512xf32, #tpu.memory_space<vmem>>, vector<1x2x256xf32>
    %539 = vector.shape_cast %538 : vector<1x2x256xf32> to vector<2x256xf32>
    %540 = vector.broadcast %532 : f32 to vector<2x256xf32>
    %541 = arith.mulf %540, %539 : vector<2x256xf32>
    %542 = arith.addf %537, %541 : vector<2x256xf32>
    %c40 = arith.constant 40 : index
    %543 = memref.load %arg5[%c40] : memref<98xf32, #tpu.memory_space<smem>>
    %c89 = arith.constant 89 : index
    %544 = memref.load %arg5[%c89] : memref<98xf32, #tpu.memory_space<smem>>
    %c0_256 = arith.constant 0 : index
    %c0_257 = arith.constant 0 : index
    %c162 = arith.constant 162 : index
    %545 = vector.load %arg8[%c0_256, %c0_257, %c162] : memref<2x2x512xf32, #tpu.memory_space<vmem>>, vector<1x2x256xf32>
    %546 = vector.shape_cast %545 : vector<1x2x256xf32> to vector<2x256xf32>
    %547 = vector.broadcast %543 : f32 to vector<2x256xf32>
    %548 = arith.mulf %547, %546 : vector<2x256xf32>
    %549 = arith.addf %542, %548 : vector<2x256xf32>
    %c1_258 = arith.constant 1 : index
    %c0_259 = arith.constant 0 : index
    %c162_260 = arith.constant 162 : index
    %550 = vector.load %arg8[%c1_258, %c0_259, %c162_260] : memref<2x2x512xf32, #tpu.memory_space<vmem>>, vector<1x2x256xf32>
    %551 = vector.shape_cast %550 : vector<1x2x256xf32> to vector<2x256xf32>
    %552 = vector.broadcast %544 : f32 to vector<2x256xf32>
    %553 = arith.mulf %552, %551 : vector<2x256xf32>
    %554 = arith.addf %549, %553 : vector<2x256xf32>
    %c47 = arith.constant 47 : index
    %555 = memref.load %arg5[%c47] : memref<98xf32, #tpu.memory_space<smem>>
    %c96_261 = arith.constant 96 : index
    %556 = memref.load %arg5[%c96_261] : memref<98xf32, #tpu.memory_space<smem>>
    %c0_262 = arith.constant 0 : index
    %c0_263 = arith.constant 0 : index
    %c178 = arith.constant 178 : index
    %557 = vector.load %arg8[%c0_262, %c0_263, %c178] : memref<2x2x512xf32, #tpu.memory_space<vmem>>, vector<1x2x256xf32>
    %558 = vector.shape_cast %557 : vector<1x2x256xf32> to vector<2x256xf32>
    %559 = vector.broadcast %555 : f32 to vector<2x256xf32>
    %560 = arith.mulf %559, %558 : vector<2x256xf32>
    %561 = arith.addf %554, %560 : vector<2x256xf32>
    %c1_264 = arith.constant 1 : index
    %c0_265 = arith.constant 0 : index
    %c178_266 = arith.constant 178 : index
    %562 = vector.load %arg8[%c1_264, %c0_265, %c178_266] : memref<2x2x512xf32, #tpu.memory_space<vmem>>, vector<1x2x256xf32>
    %563 = vector.shape_cast %562 : vector<1x2x256xf32> to vector<2x256xf32>
    %564 = vector.broadcast %556 : f32 to vector<2x256xf32>
    %565 = arith.mulf %564, %563 : vector<2x256xf32>
    %566 = arith.addf %561, %565 : vector<2x256xf32>
    %c5_267 = arith.constant 5 : index
    %c0_268 = arith.constant 0 : index
    %567 = vector.load %arg4[%c5_267, %c0_268] : memref<7x256xf32, #tpu.memory_space<vmem>>, vector<1x256xf32>
    %568 = vector.broadcast %567 : vector<1x256xf32> to vector<2x256xf32>
    %569 = arith.mulf %568, %566 : vector<2x256xf32>
    %570 = arith.addf %481, %569 : vector<2x256xf32>
    %cst_269 = arith.constant 0.000000e+00 : f32
    %571 = vector.broadcast %cst_269 : f32 to vector<2x256xf32>
    %c6 = arith.constant 6 : index
    %572 = memref.load %arg5[%c6] : memref<98xf32, #tpu.memory_space<smem>>
    %c55 = arith.constant 55 : index
    %573 = memref.load %arg5[%c55] : memref<98xf32, #tpu.memory_space<smem>>
    %c0_270 = arith.constant 0 : index
    %c0_271 = arith.constant 0 : index
    %c83 = arith.constant 83 : index
    %574 = vector.load %arg8[%c0_270, %c0_271, %c83] : memref<2x2x512xf32, #tpu.memory_space<vmem>>, vector<1x2x256xf32>
    %575 = vector.shape_cast %574 : vector<1x2x256xf32> to vector<2x256xf32>
    %576 = vector.broadcast %572 : f32 to vector<2x256xf32>
    %577 = arith.mulf %576, %575 : vector<2x256xf32>
    %578 = arith.addf %571, %577 : vector<2x256xf32>
    %c1_272 = arith.constant 1 : index
    %c0_273 = arith.constant 0 : index
    %c83_274 = arith.constant 83 : index
    %579 = vector.load %arg8[%c1_272, %c0_273, %c83_274] : memref<2x2x512xf32, #tpu.memory_space<vmem>>, vector<1x2x256xf32>
    %580 = vector.shape_cast %579 : vector<1x2x256xf32> to vector<2x256xf32>
    %581 = vector.broadcast %573 : f32 to vector<2x256xf32>
    %582 = arith.mulf %581, %580 : vector<2x256xf32>
    %583 = arith.addf %578, %582 : vector<2x256xf32>
    %c13 = arith.constant 13 : index
    %584 = memref.load %arg5[%c13] : memref<98xf32, #tpu.memory_space<smem>>
    %c62 = arith.constant 62 : index
    %585 = memref.load %arg5[%c62] : memref<98xf32, #tpu.memory_space<smem>>
    %c0_275 = arith.constant 0 : index
    %c0_276 = arith.constant 0 : index
    %c99 = arith.constant 99 : index
    %586 = vector.load %arg8[%c0_275, %c0_276, %c99] : memref<2x2x512xf32, #tpu.memory_space<vmem>>, vector<1x2x256xf32>
    %587 = vector.shape_cast %586 : vector<1x2x256xf32> to vector<2x256xf32>
    %588 = vector.broadcast %584 : f32 to vector<2x256xf32>
    %589 = arith.mulf %588, %587 : vector<2x256xf32>
    %590 = arith.addf %583, %589 : vector<2x256xf32>
    %c1_277 = arith.constant 1 : index
    %c0_278 = arith.constant 0 : index
    %c99_279 = arith.constant 99 : index
    %591 = vector.load %arg8[%c1_277, %c0_278, %c99_279] : memref<2x2x512xf32, #tpu.memory_space<vmem>>, vector<1x2x256xf32>
    %592 = vector.shape_cast %591 : vector<1x2x256xf32> to vector<2x256xf32>
    %593 = vector.broadcast %585 : f32 to vector<2x256xf32>
    %594 = arith.mulf %593, %592 : vector<2x256xf32>
    %595 = arith.addf %590, %594 : vector<2x256xf32>
    %c20 = arith.constant 20 : index
    %596 = memref.load %arg5[%c20] : memref<98xf32, #tpu.memory_space<smem>>
    %c69 = arith.constant 69 : index
    %597 = memref.load %arg5[%c69] : memref<98xf32, #tpu.memory_space<smem>>
    %c0_280 = arith.constant 0 : index
    %c0_281 = arith.constant 0 : index
    %c115 = arith.constant 115 : index
    %598 = vector.load %arg8[%c0_280, %c0_281, %c115] : memref<2x2x512xf32, #tpu.memory_space<vmem>>, vector<1x2x256xf32>
    %599 = vector.shape_cast %598 : vector<1x2x256xf32> to vector<2x256xf32>
    %600 = vector.broadcast %596 : f32 to vector<2x256xf32>
    %601 = arith.mulf %600, %599 : vector<2x256xf32>
    %602 = arith.addf %595, %601 : vector<2x256xf32>
    %c1_282 = arith.constant 1 : index
    %c0_283 = arith.constant 0 : index
    %c115_284 = arith.constant 115 : index
    %603 = vector.load %arg8[%c1_282, %c0_283, %c115_284] : memref<2x2x512xf32, #tpu.memory_space<vmem>>, vector<1x2x256xf32>
    %604 = vector.shape_cast %603 : vector<1x2x256xf32> to vector<2x256xf32>
    %605 = vector.broadcast %597 : f32 to vector<2x256xf32>
    %606 = arith.mulf %605, %604 : vector<2x256xf32>
    %607 = arith.addf %602, %606 : vector<2x256xf32>
    %c27 = arith.constant 27 : index
    %608 = memref.load %arg5[%c27] : memref<98xf32, #tpu.memory_space<smem>>
    %c76 = arith.constant 76 : index
    %609 = memref.load %arg5[%c76] : memref<98xf32, #tpu.memory_space<smem>>
    %c0_285 = arith.constant 0 : index
    %c0_286 = arith.constant 0 : index
    %c131 = arith.constant 131 : index
    %610 = vector.load %arg8[%c0_285, %c0_286, %c131] : memref<2x2x512xf32, #tpu.memory_space<vmem>>, vector<1x2x256xf32>
    %611 = vector.shape_cast %610 : vector<1x2x256xf32> to vector<2x256xf32>
    %612 = vector.broadcast %608 : f32 to vector<2x256xf32>
    %613 = arith.mulf %612, %611 : vector<2x256xf32>
    %614 = arith.addf %607, %613 : vector<2x256xf32>
    %c1_287 = arith.constant 1 : index
    %c0_288 = arith.constant 0 : index
    %c131_289 = arith.constant 131 : index
    %615 = vector.load %arg8[%c1_287, %c0_288, %c131_289] : memref<2x2x512xf32, #tpu.memory_space<vmem>>, vector<1x2x256xf32>
    %616 = vector.shape_cast %615 : vector<1x2x256xf32> to vector<2x256xf32>
    %617 = vector.broadcast %609 : f32 to vector<2x256xf32>
    %618 = arith.mulf %617, %616 : vector<2x256xf32>
    %619 = arith.addf %614, %618 : vector<2x256xf32>
    %c34 = arith.constant 34 : index
    %620 = memref.load %arg5[%c34] : memref<98xf32, #tpu.memory_space<smem>>
    %c83_290 = arith.constant 83 : index
    %621 = memref.load %arg5[%c83_290] : memref<98xf32, #tpu.memory_space<smem>>
    %c0_291 = arith.constant 0 : index
    %c0_292 = arith.constant 0 : index
    %c147 = arith.constant 147 : index
    %622 = vector.load %arg8[%c0_291, %c0_292, %c147] : memref<2x2x512xf32, #tpu.memory_space<vmem>>, vector<1x2x256xf32>
    %623 = vector.shape_cast %622 : vector<1x2x256xf32> to vector<2x256xf32>
    %624 = vector.broadcast %620 : f32 to vector<2x256xf32>
    %625 = arith.mulf %624, %623 : vector<2x256xf32>
    %626 = arith.addf %619, %625 : vector<2x256xf32>
    %c1_293 = arith.constant 1 : index
    %c0_294 = arith.constant 0 : index
    %c147_295 = arith.constant 147 : index
    %627 = vector.load %arg8[%c1_293, %c0_294, %c147_295] : memref<2x2x512xf32, #tpu.memory_space<vmem>>, vector<1x2x256xf32>
    %628 = vector.shape_cast %627 : vector<1x2x256xf32> to vector<2x256xf32>
    %629 = vector.broadcast %621 : f32 to vector<2x256xf32>
    %630 = arith.mulf %629, %628 : vector<2x256xf32>
    %631 = arith.addf %626, %630 : vector<2x256xf32>
    %c41 = arith.constant 41 : index
    %632 = memref.load %arg5[%c41] : memref<98xf32, #tpu.memory_space<smem>>
    %c90 = arith.constant 90 : index
    %633 = memref.load %arg5[%c90] : memref<98xf32, #tpu.memory_space<smem>>
    %c0_296 = arith.constant 0 : index
    %c0_297 = arith.constant 0 : index
    %c163 = arith.constant 163 : index
    %634 = vector.load %arg8[%c0_296, %c0_297, %c163] : memref<2x2x512xf32, #tpu.memory_space<vmem>>, vector<1x2x256xf32>
    %635 = vector.shape_cast %634 : vector<1x2x256xf32> to vector<2x256xf32>
    %636 = vector.broadcast %632 : f32 to vector<2x256xf32>
    %637 = arith.mulf %636, %635 : vector<2x256xf32>
    %638 = arith.addf %631, %637 : vector<2x256xf32>
    %c1_298 = arith.constant 1 : index
    %c0_299 = arith.constant 0 : index
    %c163_300 = arith.constant 163 : index
    %639 = vector.load %arg8[%c1_298, %c0_299, %c163_300] : memref<2x2x512xf32, #tpu.memory_space<vmem>>, vector<1x2x256xf32>
    %640 = vector.shape_cast %639 : vector<1x2x256xf32> to vector<2x256xf32>
    %641 = vector.broadcast %633 : f32 to vector<2x256xf32>
    %642 = arith.mulf %641, %640 : vector<2x256xf32>
    %643 = arith.addf %638, %642 : vector<2x256xf32>
    %c48 = arith.constant 48 : index
    %644 = memref.load %arg5[%c48] : memref<98xf32, #tpu.memory_space<smem>>
    %c97_301 = arith.constant 97 : index
    %645 = memref.load %arg5[%c97_301] : memref<98xf32, #tpu.memory_space<smem>>
    %c0_302 = arith.constant 0 : index
    %c0_303 = arith.constant 0 : index
    %c179 = arith.constant 179 : index
    %646 = vector.load %arg8[%c0_302, %c0_303, %c179] : memref<2x2x512xf32, #tpu.memory_space<vmem>>, vector<1x2x256xf32>
    %647 = vector.shape_cast %646 : vector<1x2x256xf32> to vector<2x256xf32>
    %648 = vector.broadcast %644 : f32 to vector<2x256xf32>
    %649 = arith.mulf %648, %647 : vector<2x256xf32>
    %650 = arith.addf %643, %649 : vector<2x256xf32>
    %c1_304 = arith.constant 1 : index
    %c0_305 = arith.constant 0 : index
    %c179_306 = arith.constant 179 : index
    %651 = vector.load %arg8[%c1_304, %c0_305, %c179_306] : memref<2x2x512xf32, #tpu.memory_space<vmem>>, vector<1x2x256xf32>
    %652 = vector.shape_cast %651 : vector<1x2x256xf32> to vector<2x256xf32>
    %653 = vector.broadcast %645 : f32 to vector<2x256xf32>
    %654 = arith.mulf %653, %652 : vector<2x256xf32>
    %655 = arith.addf %650, %654 : vector<2x256xf32>
    %c6_307 = arith.constant 6 : index
    %c0_308 = arith.constant 0 : index
    %656 = vector.load %arg4[%c6_307, %c0_308] : memref<7x256xf32, #tpu.memory_space<vmem>>, vector<1x256xf32>
    %657 = vector.broadcast %656 : vector<1x256xf32> to vector<2x256xf32>
    %658 = arith.mulf %657, %655 : vector<2x256xf32>
    %659 = arith.addf %570, %658 : vector<2x256xf32>
    %c0_309 = arith.constant 0 : index
    %660 = memref.load %arg6[%c0_309] : memref<1xf32, #tpu.memory_space<smem>>
    %661 = vector.broadcast %660 : f32 to vector<2x256xf32>
    %662 = arith.addf %659, %661 : vector<2x256xf32>
    %cst_310 = arith.constant 0.000000e+00 : f32
    %663 = vector.broadcast %cst_310 : f32 to vector<2x256xf32>
    %664 = arith.maximumf %662, %663 : vector<2x256xf32>
    %cst_311 = arith.constant 0.000000e+00 : f32
    %665 = vector.broadcast %cst_311 : f32 to vector<2x256xf32>
    %666 = arith.subf %665, %664 : vector<2x256xf32>
    %667 = math.exp %666 : vector<2x256xf32>
    %cst_312 = arith.constant 1.000000e+00 : f32
    %668 = vector.broadcast %cst_312 : f32 to vector<2x256xf32>
    %669 = arith.addf %668, %667 : vector<2x256xf32>
    %cst_313 = arith.constant 1.000000e+00 : f32
    %670 = vector.broadcast %cst_313 : f32 to vector<2x256xf32>
    %671 = arith.divf %670, %669 : vector<2x256xf32>
    %672 = vector.extract_strided_slice %671 {offsets = [0, 0], sizes = [1, 256], strides = [1, 1]} : vector<2x256xf32> to vector<1x256xf32>
    %673 = vector.extract_strided_slice %671 {offsets = [1, 0], sizes = [1, 256], strides = [1, 1]} : vector<2x256xf32> to vector<1x256xf32>
    %674 = vector.broadcast %673 : vector<1x256xf32> to vector<4x256xf32>
    %675 = arith.mulf %1, %674 : vector<4x256xf32>
    %676 = arith.subf %672, %673 : vector<1x256xf32>
    %677 = vector.broadcast %676 : vector<1x256xf32> to vector<4x256xf32>
    %678 = arith.mulf %5, %677 : vector<4x256xf32>
    %679 = arith.addf %675, %678 : vector<4x256xf32>
    %c0_314 = arith.constant 0 : index
    %c0_315 = arith.constant 0 : index
    %c0_316 = arith.constant 0 : index
    %680 = vector.load %arg7[%c0_314, %c0_315, %c0_316] : memref<1x4x256xf32, #tpu.memory_space<vmem>>, vector<1x4x256xf32>
    %681 = vector.shape_cast %680 : vector<1x4x256xf32> to vector<4x256xf32>
    %682 = vector.shape_cast %679 : vector<4x256xf32> to vector<1x4x256xf32>
    tpu.vector_store %arg7[%c0_314, %c0_315, %c0_316], %682 {strides = array<i32>} : memref<1x4x256xf32, #tpu.memory_space<vmem>>, vector<1x4x256xf32>,
    return
  }
  func.func @transform_0(%arg0: i32) -> (i32, i32, i32) {
    %c0_i32 = arith.constant 0 : i32
    %c0_i32_0 = arith.constant 0 : i32
    %c0_i32_1 = arith.constant 0 : i32
    return %arg0, %c0_i32, %c0_i32_0 : i32, i32, i32
  }
  func.func @transform_1(%arg0: i32) -> (i32, i32, i32) {
    %c0_i32 = arith.constant 0 : i32
    %c0_i32_0 = arith.constant 0 : i32
    %c0_i32_1 = arith.constant 0 : i32
    return %arg0, %c0_i32, %c0_i32_0 : i32, i32, i32
  }
  func.func @transform_2(%arg0: i32) -> (i32, i32, i32) {
    %c0_i32 = arith.constant 0 : i32
    %c0_i32_0 = arith.constant 0 : i32
    %c0_i32_1 = arith.constant 0 : i32
    return %arg0, %c0_i32, %c0_i32_0 : i32, i32, i32
  }
  func.func @transform_3(%arg0: i32) -> (i32, i32) {
    %c0_i32 = arith.constant 0 : i32
    %c0_i32_0 = arith.constant 0 : i32
    %c0_i32_1 = arith.constant 0 : i32
    return %c0_i32, %c0_i32_0 : i32, i32
  }
  func.func @transform_4(%arg0: i32) -> i32 {
    %c0_i32 = arith.constant 0 : i32
    %c0_i32_0 = arith.constant 0 : i32
    return %c0_i32 : i32
  }
  func.func @transform_5(%arg0: i32) -> i32 {
    %c0_i32 = arith.constant 0 : i32
    %c0_i32_0 = arith.constant 0 : i32
    return %c0_i32 : i32
  }
  func.func @transform_6(%arg0: i32) -> (i32, i32, i32) {
    %c0_i32 = arith.constant 0 : i32
    %c0_i32_0 = arith.constant 0 : i32
    %c0_i32_1 = arith.constant 0 : i32
    return %arg0, %c0_i32, %c0_i32_0 : i32, i32, i32
  }
}

</mosaic_0001>

<llo_original>
// kernel: tpu_custom_call.1
$region0: #{tpu_custom_call.1}
  #allocation0 [shape = 'u32[]', space=smem, size = 0x4, offset = 0x4, fixed_abs, tag = 'smem constant byte address 0x4 - core index']
  #allocation1 [shape = 'u32[72,128]{1,0:T(1,128)}', space=vmem, size = 0x9000, scoped, tag = 'internal scratch']
  #allocation2 [shape = 'f32[2,2,512]{2,1,0:T(2,128)}', space=vmem, size = 0x2000, scoped, tag = 'scratch operand']
  #allocation3 [shape = 'f32[1]{0:T(128)S(6)}', space=smem, size = 0x200, scoped, tag = 'scoped memory for tpu_custom_call.1']
  %s0 = inlined_call_operand.vmem [shape: f32[2,4,256], index: 0, kind: input, shape index: {}]
  %s1 = inlined_call_operand.vmem [shape: f32[2,4,1], index: 1, kind: input, shape index: {}]
  %s2 = inlined_call_operand.vmem [shape: f32[2,8,4], index: 2, kind: input, shape index: {}]
  %s3 = inlined_call_operand.hbm [shape: f32[7,256], index: 3, kind: input, shape index: {}]
  %s4 = inlined_call_operand.vmem [shape: f32[98], index: 4, kind: input, shape index: {}]
  %s5 = inlined_call_operand.<no memory space> [shape: f32[1], index: 5, kind: input, shape index: {}]
  %s6 = inlined_call_operand.hbm [shape: f32[2,4,256], index: 6, kind: output, shape index: {}]
  %s7 = sld [smem:[#allocation0]]
  $region65: #{tpu_custom_call.1} parent=0
    _
  %s9 = ssub.s32 1, %s7
  %s10 = scalar_select 0, %s9, %s7
  %11 = sst [smem:[#allocation3]] %s5
  $region1: #{tpu_custom_call.1} parent=0
    #allocation4 [shape = 'u8[8192]{0}', space=vmem, size = 0x2000, scoped, tag = 'input window, operand 3, single buffered']
    #allocation5 [shape = 's32[2]{0}', space=sflag, size = 0x8, scoped, tag = 'scoped memory for tpu_custom_call.1']
    #allocation6 [shape = 's32[2]{0}', space=sflag, size = 0x8, scoped, tag = 'scoped memory for tpu_custom_call.1']
    #allocation7 [shape = 's32[2]{0}', space=sflag, size = 0x8, scoped, tag = 'scoped memory for tpu_custom_call.1']
    #allocation8 [shape = 'u8[512]{0}', space=smem, size = 0x200, scoped, tag = 'input window, operand 4, single buffered']
    #allocation9 [shape = 'u8[8192]{0}', space=vmem, size = 0x2000, scoped, tag = 'output window, operand 0']
    %12 = vsyncpa [#allocation5], 0
    %13 = vsyncpa [#allocation7], 0
    %14 = vsyncpa [#allocation6], 0
    %s15 = scalar_lea.sflag [#allocation6], 1
    %16 = vsyncpa %s15, 0
    loop: start=0, step=1, limit=4
    $region2: #{tpu_custom_call.1} parent=1 // loop_pre_header
      _
    $region3: #{tpu_custom_call.1} parent=1 // loop_header
      %s18 = sphi 0, %s22
      %p19 = scmp.ge.s32.totalorder %s18, 4
      %s28 = sphi 0, %s30
      %s31 = sphi 0, %s28
      %s32 = sphi 0, %s31
      %s48 = sphi 0, %s32
      %s54 = sphi 0, %s56
      %s57 = sphi 0, %s54
      %s58 = sphi 0, %s57
      %s74 = sphi 0, %s58
      %s80 = sphi 0, %s82
      %s83 = sphi 0, %s80
      %s84 = sphi 0, %s83
      %s100 = sphi 0, %s84
      %s104 = sphi 0, %s104
      %s106 = sphi 0, %s104
      %s107 = sphi 0, %s106
      %s121 = sphi 0, %s107
      %s125 = sphi 0, %s125
      %s127 = sphi 0, %s125
      %s128 = sphi 0, %s127
      %s142 = sphi 0, %s128
      %s146 = sphi 0, %s146
      %s148 = sphi 0, %s146
      %s149 = sphi 0, %s148
      %s163 = sphi 0, %s149
      %s169 = sphi 0, %s171
      %s172 = sphi 0, %s169
      %s173 = sphi 0, %s172
      %s189 = sphi 0, %s173
    $region4: #{tpu_custom_call.1} parent=1 // loop_header_branch
      %21 = sbr.rel (%p19) target = $region8
    $region5: #{tpu_custom_call.1} parent=1 // loop_body
      %s23 = ssub.s32 %s18, 1
      %s24 = ssub.s32 %s18, 2
      %s25 = sadd.s32 %s18, 1
      %s26 = ssub.s32 %s18, %s25
      %p27 = scmp.eq.s32.totalorder %s26, 0
      %s29 = sadd.s32 %s28, 1
      %s30 = scalar_select %p27, %s28, %s29
      %p33 = pneg %p27
      %p34 = scmp.eq.s32.totalorder %s18, 1
      %p35 = por %p33, %p34
      %p36 = scmp.ne.s32.totalorder %s28, %s31
      %p37 = scmp.eq.s32.totalorder %s18, 0
      %p38 = por %p36, %p37
      %p39 = scmp.ne.s32.totalorder %s28, %s31
      %p40 = scmp.eq.s32.totalorder %s23, 1
      %p41 = por %p39, %p40
      %p42 = scmp.ne.s32.totalorder %s31, %s32
      %p43 = scmp.eq.s32.totalorder %s23, 0
      %p44 = por %p42, %p43
      %p45 = scmp.ne.s32.totalorder %s31, %s32
      %p46 = scmp.eq.s32.totalorder %s24, 1
      %p47 = por %p45, %p46
      %p49 = scmp.ne.s32.totalorder %s32, %s48
      %p50 = scmp.eq.s32.totalorder %s24, 0
      %p51 = por %p49, %p50
      %s52 = ssub.s32 %s18, %s25
      %p53 = scmp.eq.s32.totalorder %s52, 0
      %s55 = sadd.s32 %s54, 1
      %s56 = scalar_select %p53, %s54, %s55
      %p59 = pneg %p53
      %p60 = scmp.eq.s32.totalorder %s18, 1
      %p61 = por %p59, %p60
      %p62 = scmp.ne.s32.totalorder %s54, %s57
      %p63 = scmp.eq.s32.totalorder %s18, 0
      %p64 = por %p62, %p63
      %p65 = scmp.ne.s32.totalorder %s54, %s57
      %p66 = scmp.eq.s32.totalorder %s23, 1
      %p67 = por %p65, %p66
      %p68 = scmp.ne.s32.totalorder %s57, %s58
      %p69 = scmp.eq.s32.totalorder %s23, 0
      %p70 = por %p68, %p69
      %p71 = scmp.ne.s32.totalorder %s57, %s58
      %p72 = scmp.eq.s32.totalorder %s24, 1
      %p73 = por %p71, %p72
      %p75 = scmp.ne.s32.totalorder %s58, %s74
      %p76 = scmp.eq.s32.totalorder %s24, 0
      %p77 = por %p75, %p76
      %s78 = ssub.s32 %s18, %s25
      %p79 = scmp.eq.s32.totalorder %s78, 0
      %s81 = sadd.s32 %s80, 1
      %s82 = scalar_select %p79, %s80, %s81
      %p85 = pneg %p79
      %p86 = scmp.eq.s32.totalorder %s18, 1
      %p87 = por %p85, %p86
      %p88 = scmp.ne.s32.totalorder %s80, %s83
      %p89 = scmp.eq.s32.totalorder %s18, 0
      %p90 = por %p88, %p89
      %p91 = scmp.ne.s32.totalorder %s80, %s83
      %p92 = scmp.eq.s32.totalorder %s23, 1
      %p93 = por %p91, %p92
      %p94 = scmp.ne.s32.totalorder %s83, %s84
      %p95 = scmp.eq.s32.totalorder %s23, 0
      %p96 = por %p94, %p95
      %p97 = scmp.ne.s32.totalorder %s83, %s84
      %p98 = scmp.eq.s32.totalorder %s24, 1
      %p99 = por %p97, %p98
      %p101 = scmp.ne.s32.totalorder %s84, %s100
      %p102 = scmp.eq.s32.totalorder %s24, 0
      %p103 = por %p101, %p102
      %s105 = sadd.s32 %s104, 1
      %p108 = scmp.eq.s32.totalorder %s18, 1
      %p109 = scmp.ne.s32.totalorder %s104, %s106
      %p110 = scmp.eq.s32.totalorder %s18, 0
      %p111 = por %p109, %p110
      %p112 = scmp.ne.s32.totalorder %s104, %s106
      %p113 = scmp.eq.s32.totalorder %s23, 1
      %p114 = por %p112, %p113
      %p115 = scmp.ne.s32.totalorder %s106, %s107
      %p116 = scmp.eq.s32.totalorder %s23, 0
      %p117 = por %p115, %p116
      %p118 = scmp.ne.s32.totalorder %s106, %s107
      %p119 = scmp.eq.s32.totalorder %s24, 1
      %p120 = por %p118, %p119
      %p122 = scmp.ne.s32.totalorder %s107, %s121
      %p123 = scmp.eq.s32.totalorder %s24, 0
      %p124 = por %p122, %p123
      %s126 = sadd.s32 %s125, 1
      %p129 = scmp.eq.s32.totalorder %s18, 1
      %p130 = scmp.ne.s32.totalorder %s125, %s127
      %p131 = scmp.eq.s32.totalorder %s18, 0
      %p132 = por %p130, %p131
      %p133 = scmp.ne.s32.totalorder %s125, %s127
      %p134 = scmp.eq.s32.totalorder %s23, 1
      %p135 = por %p133, %p134
      %p136 = scmp.ne.s32.totalorder %s127, %s128
      %p137 = scmp.eq.s32.totalorder %s23, 0
      %p138 = por %p136, %p137
      %p139 = scmp.ne.s32.totalorder %s127, %s128
      %p140 = scmp.eq.s32.totalorder %s24, 1
      %p141 = por %p139, %p140
      %p143 = scmp.ne.s32.totalorder %s128, %s142
      %p144 = scmp.eq.s32.totalorder %s24, 0
      %p145 = por %p143, %p144
      %s147 = sadd.s32 %s146, 1
      %p150 = scmp.eq.s32.totalorder %s18, 1
      %p151 = scmp.ne.s32.totalorder %s146, %s148
      %p152 = scmp.eq.s32.totalorder %s18, 0
      %p153 = por %p151, %p152
      %p154 = scmp.ne.s32.totalorder %s146, %s148
      %p155 = scmp.eq.s32.totalorder %s23, 1
      %p156 = por %p154, %p155
      %p157 = scmp.ne.s32.totalorder %s148, %s149
      %p158 = scmp.eq.s32.totalorder %s23, 0
      %p159 = por %p157, %p158
      %p160 = scmp.ne.s32.totalorder %s148, %s149
      %p161 = scmp.eq.s32.totalorder %s24, 1
      %p162 = por %p160, %p161
      %p164 = scmp.ne.s32.totalorder %s149, %s163
      %p165 = scmp.eq.s32.totalorder %s24, 0
      %p166 = por %p164, %p165
      %s167 = ssub.s32 %s18, %s25
      %p168 = scmp.eq.s32.totalorder %s167, 0
      %s170 = sadd.s32 %s169, 1
      %s171 = scalar_select %p168, %s169, %s170
      %p174 = pneg %p168
      %p175 = scmp.eq.s32.totalorder %s18, 1
      %p176 = por %p174, %p175
      %p177 = scmp.ne.s32.totalorder %s169, %s172
      %p178 = scmp.eq.s32.totalorder %s18, 0
      %p179 = por %p177, %p178
      %p180 = scmp.ne.s32.totalorder %s169, %s172
      %p181 = scmp.eq.s32.totalorder %s23, 1
      %p182 = por %p180, %p181
      %p183 = scmp.ne.s32.totalorder %s172, %s173
      %p184 = scmp.eq.s32.totalorder %s23, 0
      %p185 = por %p183, %p184
      %p186 = scmp.ne.s32.totalorder %s172, %s173
      %p187 = scmp.eq.s32.totalorder %s24, 1
      %p188 = por %p186, %p187
      %p190 = scmp.ne.s32.totalorder %s173, %s189
      %p191 = scmp.eq.s32.totalorder %s24, 0
      %p192 = por %p190, %p191
      %p193 = scmp.le.s32.totalorder 1, %s18
      %p194 = scmp.lt.s32.totalorder %s18, 3
      %p195 = pnand %p193, %p194
      %p196 = pneg %p195
      // Predicated region
      $region9: #{tpu_custom_call.1} parent=5 // pred_check
        _
      $region10: #{tpu_custom_call.1} parent=5 // pred_check_branch
        %198 = sbr.rel (%p195) target = $region12
      $region11: #{tpu_custom_call.1} parent=5 // pred_region
        %s199 = ssub.s32 %s18, 1
        // Predicated region
        $region13: #{tpu_custom_call.1} parent=11 // pred_check
          %p200 = pneg %p117
        $region14: #{tpu_custom_call.1} parent=11 // pred_check_branch
          %202 = sbr.rel (%p200) target = $region16
        $region15: #{tpu_custom_call.1} parent=11 // pred_region
          %204 = vsyncadd [#allocation5], 0
          %s206 = sshll.u32 %s3, 4
          %s207 = int_to_ptr.hbm [resolvable:$true] %s206
          %s208 = sshll.u32 [#allocation4], 4
          %s209 = int_to_ptr.vmem [resolvable:$true] %s208
          %211 = dma.hbm_to_vmem [thread:$0]  %s207, 256, %s209, [#allocation5]
        $region16: #{tpu_custom_call.1} parent=11 // pred_fallthru
          _
        // Predicated region
        $region17: #{tpu_custom_call.1} parent=11 // pred_check
          %p212 = pneg %p138
        $region18: #{tpu_custom_call.1} parent=11 // pred_check_branch
          %214 = sbr.rel (%p212) target = $region20
        $region19: #{tpu_custom_call.1} parent=11 // pred_region
          %216 = vsyncadd [#allocation7], 0
          %s218 = sshll.u32 %s4, 4
          %s219 = int_to_ptr.vmem [resolvable:$true] %s218
          %221 = dma.vmem_to_smem %s219, 16, [#allocation8], [#allocation7]
        $region20: #{tpu_custom_call.1} parent=11 // pred_fallthru
          _
        // Predicated region
        $region21: #{tpu_custom_call.1} parent=11 // pred_check
          %p222 = pneg %p159
        $region22: #{tpu_custom_call.1} parent=11 // pred_check_branch
          %224 = sbr.rel (%p222) target = $region24
        $region23: #{tpu_custom_call.1} parent=11 // pred_region
          _
        $region24: #{tpu_custom_call.1} parent=11 // pred_fallthru
          _
      $region12: #{tpu_custom_call.1} parent=5 // pred_fallthru
        _
      %p225 = scmp.lt.s32.totalorder %s18, 2
      // Predicated region
      $region25: #{tpu_custom_call.1} parent=5 // pred_check
        %p226 = pneg %p225
      $region26: #{tpu_custom_call.1} parent=5 // pred_check_branch
        %228 = sbr.rel (%p226) target = $region28
      $region27: #{tpu_custom_call.1} parent=5 // pred_region
        // Predicated region
        $region29: #{tpu_custom_call.1} parent=27 // pred_check
          %p229 = pneg %p38
        $region30: #{tpu_custom_call.1} parent=27 // pred_check_branch
          %231 = sbr.rel (%p229) target = $region32
        $region31: #{tpu_custom_call.1} parent=27 // pred_region
          %p232 = scmp.lt.s32.totalorder %s18, 1
          %s233 = scalar_select %p232, %s18, 1
          %s234 = smul.addr %s233, 2
          %s235 = smul.addr %s234, 4
          %s236 = scalar_lea.vmem %s0, %s235
        $region32: #{tpu_custom_call.1} parent=27 // pred_fallthru
          _
        // Predicated region
        $region33: #{tpu_custom_call.1} parent=27 // pred_check
          %p237 = pneg %p64
        $region34: #{tpu_custom_call.1} parent=27 // pred_check_branch
          %239 = sbr.rel (%p237) target = $region36
        $region35: #{tpu_custom_call.1} parent=27 // pred_region
          %p240 = scmp.lt.s32.totalorder %s18, 1
          %s241 = scalar_select %p240, %s18, 1
          %s242 = smul.addr %s241, 4
          %s243 = scalar_lea.vmem %s1, %s242
        $region36: #{tpu_custom_call.1} parent=27 // pred_fallthru
          _
        // Predicated region
        $region37: #{tpu_custom_call.1} parent=27 // pred_check
          %p244 = pneg %p90
        $region38: #{tpu_custom_call.1} parent=27 // pred_check_branch
          %246 = sbr.rel (%p244) target = $region40
        $region39: #{tpu_custom_call.1} parent=27 // pred_region
          %p247 = scmp.lt.s32.totalorder %s18, 1
          %s248 = scalar_select %p247, %s18, 1
          %s249 = smul.addr %s248, 8
          %s250 = scalar_lea.vmem %s2, %s249
        $region40: #{tpu_custom_call.1} parent=27 // pred_fallthru
          _
      $region28: #{tpu_custom_call.1} parent=5 // pred_fallthru
        _
      %p251 = scmp.le.s32.totalorder 1, %s18
      %p252 = scmp.lt.s32.totalorder %s18, 3
      %p253 = pnand %p251, %p252
      %p254 = pneg %p253
      // Predicated region
      $region41: #{tpu_custom_call.1} parent=5 // pred_check
        _
      $region42: #{tpu_custom_call.1} parent=5 // pred_check_branch
        %256 = sbr.rel (%p253) target = $region44
      $region43: #{tpu_custom_call.1} parent=5 // pred_region
        %s257 = ssub.s32 %s18, 1
        // Predicated region
        $region45: #{tpu_custom_call.1} parent=43 // pred_check
          %p258 = pneg %p117
        $region46: #{tpu_custom_call.1} parent=43 // pred_check_branch
          %260 = sbr.rel (%p258) target = $region48
        $region47: #{tpu_custom_call.1} parent=43 // pred_region
          %262 = dma.done [#allocation5], 256
        $region48: #{tpu_custom_call.1} parent=43 // pred_fallthru
          _
        // Predicated region
        $region49: #{tpu_custom_call.1} parent=43 // pred_check
          %p263 = pneg %p138
        $region50: #{tpu_custom_call.1} parent=43 // pred_check_branch
          %265 = sbr.rel (%p263) target = $region52
        $region51: #{tpu_custom_call.1} parent=43 // pred_region
          %267 = dma.done [#allocation7], 16
        $region52: #{tpu_custom_call.1} parent=43 // pred_fallthru
          _
        %268 = sfence
        %p269 = scmp.lt.s32.totalorder %s23, 1
        %s270 = scalar_select %p269, %s23, 1
        %s271 = smul.addr %s270, 2
        %s272 = smul.addr %s271, 4
        %s273 = scalar_lea.vmem %s0, %s272
        %p274 = pneg %p44
        %p275 = pneg %p41
        %p276 = scmp.lt.s32.totalorder %s23, 1
        %s277 = scalar_select %p276, %s23, 1
        %s278 = smul.addr %s277, 4
        %s279 = scalar_lea.vmem %s1, %s278
        %p280 = pneg %p70
        %p281 = pneg %p67
        %p282 = scmp.lt.s32.totalorder %s23, 1
        %s283 = scalar_select %p282, %s23, 1
        %s284 = smul.addr %s283, 8
        %s285 = scalar_lea.vmem %s2, %s284
        %p286 = pneg %p96
        %p287 = pneg %p93
        %p288 = pneg %p117
        %p289 = pneg %p114
        %p290 = pneg %p138
        %p291 = pneg %p135
        %p292 = pneg %p159
        %p293 = pneg %p156
        %p294 = pneg %p185
        %p295 = pneg %p182
        %s296 = sand.u32 %s172, 1
        %s297 = scalar_lea.sflag [#allocation6], %s296
        %s298 = sand.u32 %s172, 1
        %s299 = smul.addr %s298, 8
        %s300 = scalar_lea.vmem [#allocation9], %s299
        %p301 = scmp.lt.s32.totalorder %s23, 1
        %s302 = scalar_select %p301, %s23, 1
        %s303 = smul.addr %s302, 2
        %s304 = smul.addr %s303, 4
        %s305 = scalar_lea.vmem %s0, %s304
        %p306 = scmp.lt.s32.totalorder %s23, 1
        %s307 = scalar_select %p306, %s23, 1
        %s308 = smul.addr %s307, 4
        %s309 = scalar_lea.vmem %s1, %s308
        %p310 = scmp.lt.s32.totalorder %s23, 1
        %s311 = scalar_select %p310, %s23, 1
        %s312 = smul.addr %s311, 8
        %s313 = scalar_lea.vmem %s2, %s312
        %v314 = vld [vmem:[%s305] sm:$0xff]
        %v315 = vld [vmem:[%s309] sm:$0xf]
        %317 = vset.pattern.permute.xlu0 0
        %318 = vperm.xlu0 %317, %v315
        %v319 = vpop.permute.xlu0 %318
        %322 = vst [vmem:[#allocation1] ss:$2 sm:$0xff] %v314
        %v323 = vld.sshfl [vmem:[#allocation1] sm:$0xff pattern:$0x75316420]
        %v324 = vld.sshfl [vmem:[#allocation1 + $0x8] sm:$0xff pattern:$0x75316420]
        %v327 = vmul.f32 %v319, %v323
        %v328 = vmul.f32 %v319, %v324
        %v331 = vrot.slane %v328, 4
        %vm332 = vcmask 1043456
        %v333 = vsel %vm332, %v327, %v331
        %v335 = vsub.f32 %v314, %v333
        %v336 = vsel %vm332, %v327, 0.0
        %v337 = vrot.slane %v336, 4
        %v338 = vadd.f32 %v336, %v337
        %v339 = vrot.slane %v338, 2
        %v340 = vadd.f32 %v338, %v339
        %v341 = vrot.slane %v340, 1
        %v342 = vadd.f32 %v340, %v341
        %v343 = vsel %vm332, %v328, 0.0
        %v344 = vrot.slane %v343, 4
        %v345 = vadd.f32 %v343, %v344
        %v346 = vrot.slane %v345, 2
        %v347 = vadd.f32 %v345, %v346
        %v348 = vrot.slane %v347, 1
        %v349 = vadd.f32 %v347, %v348
        %350 = vst [vmem:[#allocation1] ss:$2 sm:$0xff] %v314
        %v351 = vld.sshfl [vmem:[#allocation1] sm:$0xff pattern:$0x75316420]
        %v352 = vld.sshfl [vmem:[#allocation1 + $0x8] sm:$0xff pattern:$0x75316420]
        %v355 = vsel %vm332, %v351, 0.0
        %v356 = vrot.slane %v355, 4
        %v357 = vadd.f32 %v355, %v356
        %v358 = vrot.slane %v357, 2
        %v359 = vadd.f32 %v357, %v358
        %v360 = vrot.slane %v359, 1
        %v361 = vadd.f32 %v359, %v360
        %v362 = vsel %vm332, %v352, 0.0
        %v363 = vrot.slane %v362, 4
        %v364 = vadd.f32 %v362, %v363
        %v365 = vrot.slane %v364, 2
        %v366 = vadd.f32 %v364, %v365
        %v367 = vrot.slane %v366, 1
        %v368 = vadd.f32 %v366, %v367
        %v369 = vsub.f32 %v361, %v342
        %v370 = vsub.f32 %v368, %v349
        %v371 = vmul.f32 %v342, 0.5
        %v372 = vmul.f32 %v349, 0.5
        %v373 = vmul.f32 %v369, 0.5
        %v374 = vmul.f32 %v370, 0.5
        %v375 = vsel %vm332, %v327, -inf
        %v376 = vrot.slane %v375, 4
        %v377 = vmax.f32 %v375, %v376
        %v378 = vrot.slane %v377, 2
        %v379 = vmax.f32 %v377, %v378
        %v380 = vrot.slane %v379, 1
        %v381 = vmax.f32 %v379, %v380
        %v382 = vsel %vm332, %v328, -inf
        %v383 = vrot.slane %v382, 4
        %v384 = vmax.f32 %v382, %v383
        %v385 = vrot.slane %v384, 2
        %v386 = vmax.f32 %v384, %v385
        %v387 = vrot.slane %v386, 1
        %v388 = vmax.f32 %v386, %v387
        %390 = vst [vmem:[#allocation1] ss:$2 sm:$0xff] %v335
        %v391 = vld.sshfl [vmem:[#allocation1] sm:$0xff pattern:$0x75316420]
        %v392 = vld.sshfl [vmem:[#allocation1 + $0x8] sm:$0xff pattern:$0x75316420]
        %v395 = vsel %vm332, %v391, -inf
        %v396 = vrot.slane %v395, 4
        %v397 = vmax.f32 %v395, %v396
        %v398 = vrot.slane %v397, 2
        %v399 = vmax.f32 %v397, %v398
        %v400 = vrot.slane %v399, 1
        %v401 = vmax.f32 %v399, %v400
        %v402 = vsel %vm332, %v392, -inf
        %v403 = vrot.slane %v402, 4
        %v404 = vmax.f32 %v402, %v403
        %v405 = vrot.slane %v404, 2
        %v406 = vmax.f32 %v404, %v405
        %v407 = vrot.slane %v406, 1
        %v408 = vmax.f32 %v406, %v407
        %409 = vst [vmem:[#allocation2] sm:$0x3] 0.0
        %410 = vst [vmem:[#allocation2 + $0x8] sm:$0x3] 0.0
        %411 = vst [vmem:[#allocation2 + $0x6] sm:$0x3] 0.0
        %412 = vst [vmem:[#allocation2 + $0xe] sm:$0x3] 0.0
        %v415 = vrot.slane %v372, 7
        %vm416 = vcmask 1040384
        %v417 = vsel %vm416, %v371, %v415
        %v419 = vlaneseq
        %vm420 = vcmp.ge.s32.totalorder %v419, 0
        %vm421 = vcmp.lt.s32.totalorder %v419, 256
        %vm422 = vmand %vm420, %vm421
        %s423 = scalar_lea.vmem [#allocation2], 2
        %424 = vst.msk [vmem:[%s423] ss:$2 sm:$0x3] %vm422, %v417
        %v427 = vrot.slane %v374, 7
        %v428 = vsel %vm416, %v373, %v427
        %s430 = scalar_lea.vmem [#allocation2], 3
        %431 = vst.msk [vmem:[%s430] ss:$2 sm:$0x3] %vm422, %v428
        %v434 = vrot.slane %v388, 7
        %v435 = vsel %vm416, %v381, %v434
        %s437 = scalar_lea.vmem [#allocation2], 8
        %s438 = scalar_lea.vmem %s437, 2 [#allocation2]
        %439 = vst.msk [vmem:[%s438] ss:$2 sm:$0x3] %vm422, %v435
        %v442 = vrot.slane %v408, 7
        %v443 = vsel %vm416, %v401, %v442
        %s445 = scalar_lea.vmem %s437, 3 [#allocation2]
        %446 = vst.msk [vmem:[%s445] ss:$2 sm:$0x3] %vm422, %v443
        %s447 = sld [smem:[#allocation8]]
        %s448 = sld [smem:[#allocation8 + $0x31]]
        %v449 = vld [vmem:[#allocation2] sm:$0x3f]
        %v450 = vstv %s447
        %v451 = vmul.f32 %v450, %v449
        %v452 = vadd.f32 %v451, 0.0
        %v453 = vld [vmem:[%s437] sm:$0x3f]
        %v454 = vstv %s448
        %v455 = vmul.f32 %v454, %v453
        %v456 = vadd.f32 %v452, %v455
        %s457 = sld [smem:[#allocation8 + $0x7]]
        %s458 = sld [smem:[#allocation8 + $0x38]]
        %v459 = vstv %s457
        %v460 = vmul.f32 %v459, %v449
        %462 = vrot.lane.b32.xlu0 %v460, 112
        %v463 = vpop.permute.xlu0 %462
        %v464 = vrot.slane %v463, 2
        %vm465 = vcmask 916480
        %v466 = vsel %vm465, %v463, %v464
        %v468 = vadd.f32 %v456, %v466
        %v469 = vstv %s458
        %v470 = vmul.f32 %v469, %v453
        %472 = vrot.lane.b32.xlu0 %v470, 112
        %v473 = vpop.permute.xlu0 %472
        %v474 = vrot.slane %v473, 2
        %v475 = vsel %vm465, %v473, %v474
        %v477 = vadd.f32 %v468, %v475
        %s478 = sld [smem:[#allocation8 + $0xe]]
        %s479 = sld [smem:[#allocation8 + $0x3f]]
        %v480 = vstv %s478
        %v481 = vmul.f32 %v480, %v449
        %483 = vrot.lane.b32.xlu0 %v481, 96
        %v484 = vpop.permute.xlu0 %483
        %v485 = vrot.slane %v484, 2
        %vm486 = vcmask 785408
        %v487 = vsel %vm486, %v484, %v485
        %v489 = vadd.f32 %v477, %v487
        %v490 = vstv %s479
        %v491 = vmul.f32 %v490, %v453
        %493 = vrot.lane.b32.xlu0 %v491, 96
        %v494 = vpop.permute.xlu0 %493
        %v495 = vrot.slane %v494, 2
        %v496 = vsel %vm486, %v494, %v495
        %v498 = vadd.f32 %v489, %v496
        %s499 = sld [smem:[#allocation8 + $0x15]]
        %s500 = sld [smem:[#allocation8 + $0x46]]
        %v501 = vstv %s499
        %v502 = vmul.f32 %v501, %v449
        %504 = vrot.lane.b32.xlu0 %v502, 80
        %v505 = vpop.permute.xlu0 %504
        %v506 = vrot.slane %v505, 2
        %vm507 = vcmask 654336
        %v508 = vsel %vm507, %v505, %v506
        %v510 = vadd.f32 %v498, %v508
        %v511 = vstv %s500
        %v512 = vmul.f32 %v511, %v453
        %514 = vrot.lane.b32.xlu0 %v512, 80
        %v515 = vpop.permute.xlu0 %514
        %v516 = vrot.slane %v515, 2
        %v517 = vsel %vm507, %v515, %v516
        %v519 = vadd.f32 %v510, %v517
        %s520 = sld [smem:[#allocation8 + $0x1c]]
        %s521 = sld [smem:[#allocation8 + $0x4d]]
        %v522 = vld [vmem:[#allocation2 + $0x2] sm:$0x3f]
        %v523 = vstv %s520
        %v524 = vmul.f32 %v523, %v522
        %526 = vrot.lane.b32.xlu0 %v524, 64
        %v527 = vpop.permute.xlu0 %526
        %v528 = vrot.slane %v527, 6
        %vm529 = vcmask 523264
        %v530 = vsel %vm529, %v528, %v527
        %v532 = vadd.f32 %v519, %v530
        %v533 = vld [vmem:[%s437 + $0x2] sm:$0x3f]
        %v534 = vstv %s521
        %v535 = vmul.f32 %v534, %v533
        %537 = vrot.lane.b32.xlu0 %v535, 64
        %v538 = vpop.permute.xlu0 %537
        %v539 = vrot.slane %v538, 6
        %v540 = vsel %vm529, %v539, %v538
        %v542 = vadd.f32 %v532, %v540
        %s543 = sld [smem:[#allocation8 + $0x23]]
        %s544 = sld [smem:[#allocation8 + $0x54]]
        %v545 = vstv %s543
        %v546 = vmul.f32 %v545, %v522
        %548 = vrot.lane.b32.xlu0 %v546, 48
        %v549 = vpop.permute.xlu0 %548
        %v550 = vrot.slane %v549, 6
        %vm551 = vcmask 392192
        %v552 = vsel %vm551, %v550, %v549
        %v554 = vadd.f32 %v542, %v552
        %v555 = vstv %s544
        %v556 = vmul.f32 %v555, %v533
        %558 = vrot.lane.b32.xlu0 %v556, 48
        %v559 = vpop.permute.xlu0 %558
        %v560 = vrot.slane %v559, 6
        %v561 = vsel %vm551, %v560, %v559
        %v563 = vadd.f32 %v554, %v561
        %s564 = sld [smem:[#allocation8 + $0x2a]]
        %s565 = sld [smem:[#allocation8 + $0x5b]]
        %v566 = vstv %s564
        %v567 = vmul.f32 %v566, %v522
        %569 = vrot.lane.b32.xlu0 %v567, 32
        %v570 = vpop.permute.xlu0 %569
        %v571 = vrot.slane %v570, 6
        %vm572 = vcmask 261120
        %v573 = vsel %vm572, %v571, %v570
        %v575 = vadd.f32 %v563, %v573
        %v576 = vstv %s565
        %v577 = vmul.f32 %v576, %v533
        %579 = vrot.lane.b32.xlu0 %v577, 32
        %v580 = vpop.permute.xlu0 %579
        %v581 = vrot.slane %v580, 6
        %v582 = vsel %vm572, %v581, %v580
        %v584 = vadd.f32 %v575, %v582
        %v585 = vld [vmem:[#allocation4] ss:$8 sm:$0x3]
        %v587 = vperm.slane %v585, 0
        %v588 = vperm.slane %v585, 1
        %592 = vst [vmem:[#allocation1] ss:$4 sm:$0xff] %v584
        %v593 = vld.sshfl [vmem:[#allocation1] sm:$0xff pattern:$0x73625140]
        %v594 = vld.sshfl [vmem:[#allocation1 + $0x8] sm:$0xff pattern:$0x73625140]
        %v595 = vld.sshfl [vmem:[#allocation1 + $0x10] sm:$0xff pattern:$0x73625140]
        %596 = vrot.lane.b32.xlu0 %v593, 51
        %v597 = vpop.permute.xlu0 %596
        %598 = vrot.lane.b32.xlu0 %v594, 51
        %v599 = vpop.permute.xlu0 %598
        %600 = vrot.lane.b32.xlu0 %v595, 51
        %v601 = vpop.permute.xlu0 %600
        %vm602 = vcmask 416768
        %v603 = vsel %vm602, %v597, %v599
        %v604 = vsel %vm602, %v599, %v601
        %v607 = vmul.f32 %v587, %v603
        %v608 = vmul.f32 %v588, %v604
        %v609 = vadd.f32 %v607, 0.0
        %v610 = vadd.f32 %v608, 0.0
        %s611 = sld [smem:[#allocation8 + $0x1]]
        %s612 = sld [smem:[#allocation8 + $0x32]]
        %v613 = vld [vmem:[#allocation2] sm:$0x3f]
        %v614 = vstv %s611
        %v615 = vmul.f32 %v614, %v613
        %v616 = vadd.f32 %v615, 0.0
        %v617 = vld [vmem:[%s437] sm:$0x3f]
        %v618 = vstv %s612
        %v619 = vmul.f32 %v618, %v617
        %v620 = vadd.f32 %v616, %v619
        %s621 = sld [smem:[#allocation8 + $0x8]]
        %s622 = sld [smem:[#allocation8 + $0x39]]
        %v623 = vstv %s621
        %v624 = vmul.f32 %v623, %v613
        %626 = vrot.lane.b32.xlu0 %v624, 112
        %v627 = vpop.permute.xlu0 %626
        %v628 = vrot.slane %v627, 2
        %v629 = vsel %vm465, %v627, %v628
        %v631 = vadd.f32 %v620, %v629
        %v632 = vstv %s622
        %v633 = vmul.f32 %v632, %v617
        %635 = vrot.lane.b32.xlu0 %v633, 112
        %v636 = vpop.permute.xlu0 %635
        %v637 = vrot.slane %v636, 2
        %v638 = vsel %vm465, %v636, %v637
        %v640 = vadd.f32 %v631, %v638
        %s641 = sld [smem:[#allocation8 + $0xf]]
        %s642 = sld [smem:[#allocation8 + $0x40]]
        %v643 = vstv %s641
        %v644 = vmul.f32 %v643, %v613
        %646 = vrot.lane.b32.xlu0 %v644, 96
        %v647 = vpop.permute.xlu0 %646
        %v648 = vrot.slane %v647, 2
        %v649 = vsel %vm486, %v647, %v648
        %v651 = vadd.f32 %v640, %v649
        %v652 = vstv %s642
        %v653 = vmul.f32 %v652, %v617
        %655 = vrot.lane.b32.xlu0 %v653, 96
        %v656 = vpop.permute.xlu0 %655
        %v657 = vrot.slane %v656, 2
        %v658 = vsel %vm486, %v656, %v657
        %v660 = vadd.f32 %v651, %v658
        %s661 = sld [smem:[#allocation8 + $0x16]]
        %s662 = sld [smem:[#allocation8 + $0x47]]
        %v663 = vstv %s661
        %v664 = vmul.f32 %v663, %v613
        %666 = vrot.lane.b32.xlu0 %v664, 80
        %v667 = vpop.permute.xlu0 %666
        %v668 = vrot.slane %v667, 2
        %v669 = vsel %vm507, %v667, %v668
        %v671 = vadd.f32 %v660, %v669
        %v672 = vstv %s662
        %v673 = vmul.f32 %v672, %v617
        %675 = vrot.lane.b32.xlu0 %v673, 80
        %v676 = vpop.permute.xlu0 %675
        %v677 = vrot.slane %v676, 2
        %v678 = vsel %vm507, %v676, %v677
        %v680 = vadd.f32 %v671, %v678
        %s681 = sld [smem:[#allocation8 + $0x1d]]
        %s682 = sld [smem:[#allocation8 + $0x4e]]
        %v683 = vld [vmem:[#allocation2 + $0x2] sm:$0x3f]
        %v684 = vstv %s681
        %v685 = vmul.f32 %v684, %v683
        %687 = vrot.lane.b32.xlu0 %v685, 64
        %v688 = vpop.permute.xlu0 %687
        %v689 = vrot.slane %v688, 6
        %v690 = vsel %vm529, %v689, %v688
        %v692 = vadd.f32 %v680, %v690
        %v693 = vld [vmem:[%s437 + $0x2] sm:$0x3f]
        %v694 = vstv %s682
        %v695 = vmul.f32 %v694, %v693
        %697 = vrot.lane.b32.xlu0 %v695, 64
        %v698 = vpop.permute.xlu0 %697
        %v699 = vrot.slane %v698, 6
        %v700 = vsel %vm529, %v699, %v698
        %v702 = vadd.f32 %v692, %v700
        %s703 = sld [smem:[#allocation8 + $0x24]]
        %s704 = sld [smem:[#allocation8 + $0x55]]
        %v705 = vstv %s703
        %v706 = vmul.f32 %v705, %v683
        %708 = vrot.lane.b32.xlu0 %v706, 48
        %v709 = vpop.permute.xlu0 %708
        %v710 = vrot.slane %v709, 6
        %v711 = vsel %vm551, %v710, %v709
        %v713 = vadd.f32 %v702, %v711
        %v714 = vstv %s704
        %v715 = vmul.f32 %v714, %v693
        %717 = vrot.lane.b32.xlu0 %v715, 48
        %v718 = vpop.permute.xlu0 %717
        %v719 = vrot.slane %v718, 6
        %v720 = vsel %vm551, %v719, %v718
        %v722 = vadd.f32 %v713, %v720
        %s723 = sld [smem:[#allocation8 + $0x2b]]
        %s724 = sld [smem:[#allocation8 + $0x5c]]
        %v725 = vstv %s723
        %v726 = vmul.f32 %v725, %v683
        %728 = vrot.lane.b32.xlu0 %v726, 32
        %v729 = vpop.permute.xlu0 %728
        %v730 = vrot.slane %v729, 6
        %v731 = vsel %vm572, %v730, %v729
        %v733 = vadd.f32 %v722, %v731
        %v734 = vstv %s724
        %v735 = vmul.f32 %v734, %v693
        %737 = vrot.lane.b32.xlu0 %v735, 32
        %v738 = vpop.permute.xlu0 %737
        %v739 = vrot.slane %v738, 6
        %v740 = vsel %vm572, %v739, %v738
        %v742 = vadd.f32 %v733, %v740
        %s743 = scalar_lea.vmem [#allocation4], 1
        %v744 = vld [vmem:[%s743] ss:$8 sm:$0x3]
        %v746 = vperm.slane %v744, 0
        %v747 = vperm.slane %v744, 1
        %751 = vst [vmem:[#allocation1] ss:$4 sm:$0xff] %v742
        %v752 = vld.sshfl [vmem:[#allocation1] sm:$0xff pattern:$0x73625140]
        %v753 = vld.sshfl [vmem:[#allocation1 + $0x8] sm:$0xff pattern:$0x73625140]
        %v754 = vld.sshfl [vmem:[#allocation1 + $0x10] sm:$0xff pattern:$0x73625140]
        %755 = vrot.lane.b32.xlu0 %v752, 50
        %v756 = vpop.permute.xlu0 %755
        %757 = vrot.lane.b32.xlu0 %v753, 50
        %v758 = vpop.permute.xlu0 %757
        %759 = vrot.lane.b32.xlu0 %v754, 50
        %v760 = vpop.permute.xlu0 %759
        %vm761 = vcmask 408576
        %v762 = vsel %vm761, %v756, %v758
        %v763 = vsel %vm761, %v758, %v760
        %v766 = vmul.f32 %v746, %v762
        %v767 = vmul.f32 %v747, %v763
        %v768 = vadd.f32 %v609, %v766
        %v769 = vadd.f32 %v610, %v767
        %s770 = sld [smem:[#allocation8 + $0x2]]
        %s771 = sld [smem:[#allocation8 + $0x33]]
        %v772 = vld [vmem:[#allocation2] sm:$0x3f]
        %v773 = vstv %s770
        %v774 = vmul.f32 %v773, %v772
        %v775 = vadd.f32 %v774, 0.0
        %v776 = vld [vmem:[%s437] sm:$0x3f]
        %v777 = vstv %s771
        %v778 = vmul.f32 %v777, %v776
        %v779 = vadd.f32 %v775, %v778
        %s780 = sld [smem:[#allocation8 + $0x9]]
        %s781 = sld [smem:[#allocation8 + $0x3a]]
        %v782 = vstv %s780
        %v783 = vmul.f32 %v782, %v772
        %785 = vrot.lane.b32.xlu0 %v783, 112
        %v786 = vpop.permute.xlu0 %785
        %v787 = vrot.slane %v786, 2
        %v788 = vsel %vm465, %v786, %v787
        %v790 = vadd.f32 %v779, %v788
        %v791 = vstv %s781
        %v792 = vmul.f32 %v791, %v776
        %794 = vrot.lane.b32.xlu0 %v792, 112
        %v795 = vpop.permute.xlu0 %794
        %v796 = vrot.slane %v795, 2
        %v797 = vsel %vm465, %v795, %v796
        %v799 = vadd.f32 %v790, %v797
        %s800 = sld [smem:[#allocation8 + $0x10]]
        %s801 = sld [smem:[#allocation8 + $0x41]]
        %v802 = vstv %s800
        %v803 = vmul.f32 %v802, %v772
        %805 = vrot.lane.b32.xlu0 %v803, 96
        %v806 = vpop.permute.xlu0 %805
        %v807 = vrot.slane %v806, 2
        %v808 = vsel %vm486, %v806, %v807
        %v810 = vadd.f32 %v799, %v808
        %v811 = vstv %s801
        %v812 = vmul.f32 %v811, %v776
        %814 = vrot.lane.b32.xlu0 %v812, 96
        %v815 = vpop.permute.xlu0 %814
        %v816 = vrot.slane %v815, 2
        %v817 = vsel %vm486, %v815, %v816
        %v819 = vadd.f32 %v810, %v817
        %s820 = sld [smem:[#allocation8 + $0x17]]
        %s821 = sld [smem:[#allocation8 + $0x48]]
        %v822 = vstv %s820
        %v823 = vmul.f32 %v822, %v772
        %825 = vrot.lane.b32.xlu0 %v823, 80
        %v826 = vpop.permute.xlu0 %825
        %v827 = vrot.slane %v826, 2
        %v828 = vsel %vm507, %v826, %v827
        %v830 = vadd.f32 %v819, %v828
        %v831 = vstv %s821
        %v832 = vmul.f32 %v831, %v776
        %834 = vrot.lane.b32.xlu0 %v832, 80
        %v835 = vpop.permute.xlu0 %834
        %v836 = vrot.slane %v835, 2
        %v837 = vsel %vm507, %v835, %v836
        %v839 = vadd.f32 %v830, %v837
        %s840 = sld [smem:[#allocation8 + $0x1e]]
        %s841 = sld [smem:[#allocation8 + $0x4f]]
        %v842 = vld [vmem:[#allocation2 + $0x2] sm:$0x3f]
        %v843 = vstv %s840
        %v844 = vmul.f32 %v843, %v842
        %846 = vrot.lane.b32.xlu0 %v844, 64
        %v847 = vpop.permute.xlu0 %846
        %v848 = vrot.slane %v847, 6
        %v849 = vsel %vm529, %v848, %v847
        %v851 = vadd.f32 %v839, %v849
        %v852 = vld [vmem:[%s437 + $0x2] sm:$0x3f]
        %v853 = vstv %s841
        %v854 = vmul.f32 %v853, %v852
        %856 = vrot.lane.b32.xlu0 %v854, 64
        %v857 = vpop.permute.xlu0 %856
        %v858 = vrot.slane %v857, 6
        %v859 = vsel %vm529, %v858, %v857
        %v861 = vadd.f32 %v851, %v859
        %s862 = sld [smem:[#allocation8 + $0x25]]
        %s863 = sld [smem:[#allocation8 + $0x56]]
        %v864 = vstv %s862
        %v865 = vmul.f32 %v864, %v842
        %867 = vrot.lane.b32.xlu0 %v865, 48
        %v868 = vpop.permute.xlu0 %867
        %v869 = vrot.slane %v868, 6
        %v870 = vsel %vm551, %v869, %v868
        %v872 = vadd.f32 %v861, %v870
        %v873 = vstv %s863
        %v874 = vmul.f32 %v873, %v852
        %876 = vrot.lane.b32.xlu0 %v874, 48
        %v877 = vpop.permute.xlu0 %876
        %v878 = vrot.slane %v877, 6
        %v879 = vsel %vm551, %v878, %v877
        %v881 = vadd.f32 %v872, %v879
        %s882 = sld [smem:[#allocation8 + $0x2c]]
        %s883 = sld [smem:[#allocation8 + $0x5d]]
        %v884 = vstv %s882
        %v885 = vmul.f32 %v884, %v842
        %887 = vrot.lane.b32.xlu0 %v885, 32
        %v888 = vpop.permute.xlu0 %887
        %v889 = vrot.slane %v888, 6
        %v890 = vsel %vm572, %v889, %v888
        %v892 = vadd.f32 %v881, %v890
        %v893 = vstv %s883
        %v894 = vmul.f32 %v893, %v852
        %896 = vrot.lane.b32.xlu0 %v894, 32
        %v897 = vpop.permute.xlu0 %896
        %v898 = vrot.slane %v897, 6
        %v899 = vsel %vm572, %v898, %v897
        %v901 = vadd.f32 %v892, %v899
        %s902 = scalar_lea.vmem [#allocation4], 2
        %v903 = vld [vmem:[%s902] ss:$8 sm:$0x3]
        %v905 = vperm.slane %v903, 0
        %v906 = vperm.slane %v903, 1
        %910 = vst [vmem:[#allocation1] ss:$4 sm:$0xff] %v901
        %v911 = vld.sshfl [vmem:[#allocation1] sm:$0xff pattern:$0x73625140]
        %v912 = vld.sshfl [vmem:[#allocation1 + $0x8] sm:$0xff pattern:$0x73625140]
        %v913 = vld.sshfl [vmem:[#allocation1 + $0x10] sm:$0xff pattern:$0x73625140]
        %914 = vrot.lane.b32.xlu0 %v911, 49
        %v915 = vpop.permute.xlu0 %914
        %916 = vrot.lane.b32.xlu0 %v912, 49
        %v917 = vpop.permute.xlu0 %916
        %918 = vrot.lane.b32.xlu0 %v913, 49
        %v919 = vpop.permute.xlu0 %918
        %vm920 = vcmask 400384
        %v921 = vsel %vm920, %v915, %v917
        %v922 = vsel %vm920, %v917, %v919
        %v925 = vmul.f32 %v905, %v921
        %v926 = vmul.f32 %v906, %v922
        %v927 = vadd.f32 %v768, %v925
        %v928 = vadd.f32 %v769, %v926
        %s929 = sld [smem:[#allocation8 + $0x3]]
        %s930 = sld [smem:[#allocation8 + $0x34]]
        %v931 = vld [vmem:[#allocation2] sm:$0x3f]
        %v932 = vstv %s929
        %v933 = vmul.f32 %v932, %v931
        %v934 = vadd.f32 %v933, 0.0
        %v935 = vld [vmem:[%s437] sm:$0x3f]
        %v936 = vstv %s930
        %v937 = vmul.f32 %v936, %v935
        %v938 = vadd.f32 %v934, %v937
        %s939 = sld [smem:[#allocation8 + $0xa]]
        %s940 = sld [smem:[#allocation8 + $0x3b]]
        %v941 = vstv %s939
        %v942 = vmul.f32 %v941, %v931
        %944 = vrot.lane.b32.xlu0 %v942, 112
        %v945 = vpop.permute.xlu0 %944
        %v946 = vrot.slane %v945, 2
        %v947 = vsel %vm465, %v945, %v946
        %v949 = vadd.f32 %v938, %v947
        %v950 = vstv %s940
        %v951 = vmul.f32 %v950, %v935
        %953 = vrot.lane.b32.xlu0 %v951, 112
        %v954 = vpop.permute.xlu0 %953
        %v955 = vrot.slane %v954, 2
        %v956 = vsel %vm465, %v954, %v955
        %v958 = vadd.f32 %v949, %v956
        %s959 = sld [smem:[#allocation8 + $0x11]]
        %s960 = sld [smem:[#allocation8 + $0x42]]
        %v961 = vstv %s959
        %v962 = vmul.f32 %v961, %v931
        %964 = vrot.lane.b32.xlu0 %v962, 96
        %v965 = vpop.permute.xlu0 %964
        %v966 = vrot.slane %v965, 2
        %v967 = vsel %vm486, %v965, %v966
        %v969 = vadd.f32 %v958, %v967
        %v970 = vstv %s960
        %v971 = vmul.f32 %v970, %v935
        %973 = vrot.lane.b32.xlu0 %v971, 96
        %v974 = vpop.permute.xlu0 %973
        %v975 = vrot.slane %v974, 2
        %v976 = vsel %vm486, %v974, %v975
        %v978 = vadd.f32 %v969, %v976
        %s979 = sld [smem:[#allocation8 + $0x18]]
        %s980 = sld [smem:[#allocation8 + $0x49]]
        %v981 = vld [vmem:[#allocation2 + $0x2] sm:$0xf]
        %v982 = vstv %s979
        %v983 = vmul.f32 %v982, %v981
        %985 = vrot.lane.b32.xlu0 %v983, 80
        %v986 = vpop.permute.xlu0 %985
        %v987 = vrot.slane %v986, 6
        %v988 = vsel %vm507, %v987, %v986
        %v990 = vadd.f32 %v978, %v988
        %v991 = vld [vmem:[%s437 + $0x2] sm:$0xf]
        %v992 = vstv %s980
        %v993 = vmul.f32 %v992, %v991
        %995 = vrot.lane.b32.xlu0 %v993, 80
        %v996 = vpop.permute.xlu0 %995
        %v997 = vrot.slane %v996, 6
        %v998 = vsel %vm507, %v997, %v996
        %v1000 = vadd.f32 %v990, %v998
        %s1001 = sld [smem:[#allocation8 + $0x1f]]
        %s1002 = sld [smem:[#allocation8 + $0x50]]
        %v1003 = vld [vmem:[#allocation2 + $0x2] sm:$0x3f]
        %v1004 = vstv %s1001
        %v1005 = vmul.f32 %v1004, %v1003
        %1007 = vrot.lane.b32.xlu0 %v1005, 64
        %v1008 = vpop.permute.xlu0 %1007
        %v1009 = vrot.slane %v1008, 6
        %v1010 = vsel %vm529, %v1009, %v1008
        %v1012 = vadd.f32 %v1000, %v1010
        %v1013 = vld [vmem:[%s437 + $0x2] sm:$0x3f]
        %v1014 = vstv %s1002
        %v1015 = vmul.f32 %v1014, %v1013
        %1017 = vrot.lane.b32.xlu0 %v1015, 64
        %v1018 = vpop.permute.xlu0 %1017
        %v1019 = vrot.slane %v1018, 6
        %v1020 = vsel %vm529, %v1019, %v1018
        %v1022 = vadd.f32 %v1012, %v1020
        %s1023 = sld [smem:[#allocation8 + $0x26]]
        %s1024 = sld [smem:[#allocation8 + $0x57]]
        %v1025 = vstv %s1023
        %v1026 = vmul.f32 %v1025, %v1003
        %1028 = vrot.lane.b32.xlu0 %v1026, 48
        %v1029 = vpop.permute.xlu0 %1028
        %v1030 = vrot.slane %v1029, 6
        %v1031 = vsel %vm551, %v1030, %v1029
        %v1033 = vadd.f32 %v1022, %v1031
        %v1034 = vstv %s1024
        %v1035 = vmul.f32 %v1034, %v1013
        %1037 = vrot.lane.b32.xlu0 %v1035, 48
        %v1038 = vpop.permute.xlu0 %1037
        %v1039 = vrot.slane %v1038, 6
        %v1040 = vsel %vm551, %v1039, %v1038
        %v1042 = vadd.f32 %v1033, %v1040
        %s1043 = sld [smem:[#allocation8 + $0x2d]]
        %s1044 = sld [smem:[#allocation8 + $0x5e]]
        %v1045 = vstv %s1043
        %v1046 = vmul.f32 %v1045, %v1003
        %1048 = vrot.lane.b32.xlu0 %v1046, 32
        %v1049 = vpop.permute.xlu0 %1048
        %v1050 = vrot.slane %v1049, 6
        %v1051 = vsel %vm572, %v1050, %v1049
        %v1053 = vadd.f32 %v1042, %v1051
        %v1054 = vstv %s1044
        %v1055 = vmul.f32 %v1054, %v1013
        %1057 = vrot.lane.b32.xlu0 %v1055, 32
        %v1058 = vpop.permute.xlu0 %1057
        %v1059 = vrot.slane %v1058, 6
        %v1060 = vsel %vm572, %v1059, %v1058
        %v1062 = vadd.f32 %v1053, %v1060
        %s1063 = scalar_lea.vmem [#allocation4], 3
        %v1064 = vld [vmem:[%s1063] ss:$8 sm:$0x3]
        %v1066 = vperm.slane %v1064, 0
        %v1067 = vperm.slane %v1064, 1
        %1071 = vst [vmem:[#allocation1] ss:$4 sm:$0xff] %v1062
        %v1072 = vld.sshfl [vmem:[#allocation1] sm:$0xff pattern:$0x73625140]
        %v1073 = vld.sshfl [vmem:[#allocation1 + $0x8] sm:$0xff pattern:$0x73625140]
        %v1074 = vld.sshfl [vmem:[#allocation1 + $0x10] sm:$0xff pattern:$0x73625140]
        %1075 = vrot.lane.b32.xlu0 %v1072, 48
        %v1076 = vpop.permute.xlu0 %1075
        %1077 = vrot.lane.b32.xlu0 %v1073, 48
        %v1078 = vpop.permute.xlu0 %1077
        %1079 = vrot.lane.b32.xlu0 %v1074, 48
        %v1080 = vpop.permute.xlu0 %1079
        %v1081 = vsel %vm551, %v1076, %v1078
        %v1082 = vsel %vm551, %v1078, %v1080
        %v1085 = vmul.f32 %v1066, %v1081
        %v1086 = vmul.f32 %v1067, %v1082
        %v1087 = vadd.f32 %v927, %v1085
        %v1088 = vadd.f32 %v928, %v1086
        %s1089 = sld [smem:[#allocation8 + $0x4]]
        %s1090 = sld [smem:[#allocation8 + $0x35]]
        %v1091 = vld [vmem:[#allocation2] sm:$0x3f]
        %v1092 = vstv %s1089
        %v1093 = vmul.f32 %v1092, %v1091
        %v1094 = vadd.f32 %v1093, 0.0
        %v1095 = vld [vmem:[%s437] sm:$0x3f]
        %v1096 = vstv %s1090
        %v1097 = vmul.f32 %v1096, %v1095
        %v1098 = vadd.f32 %v1094, %v1097
        %s1099 = sld [smem:[#allocation8 + $0xb]]
        %s1100 = sld [smem:[#allocation8 + $0x3c]]
        %v1101 = vstv %s1099
        %v1102 = vmul.f32 %v1101, %v1091
        %1104 = vrot.lane.b32.xlu0 %v1102, 112
        %v1105 = vpop.permute.xlu0 %1104
        %v1106 = vrot.slane %v1105, 2
        %v1107 = vsel %vm465, %v1105, %v1106
        %v1109 = vadd.f32 %v1098, %v1107
        %v1110 = vstv %s1100
        %v1111 = vmul.f32 %v1110, %v1095
        %1113 = vrot.lane.b32.xlu0 %v1111, 112
        %v1114 = vpop.permute.xlu0 %1113
        %v1115 = vrot.slane %v1114, 2
        %v1116 = vsel %vm465, %v1114, %v1115
        %v1118 = vadd.f32 %v1109, %v1116
        %s1119 = sld [smem:[#allocation8 + $0x12]]
        %s1120 = sld [smem:[#allocation8 + $0x43]]
        %v1121 = vstv %s1119
        %v1122 = vmul.f32 %v1121, %v1091
        %1124 = vrot.lane.b32.xlu0 %v1122, 96
        %v1125 = vpop.permute.xlu0 %1124
        %v1126 = vrot.slane %v1125, 2
        %v1127 = vsel %vm486, %v1125, %v1126
        %v1129 = vadd.f32 %v1118, %v1127
        %v1130 = vstv %s1120
        %v1131 = vmul.f32 %v1130, %v1095
        %1133 = vrot.lane.b32.xlu0 %v1131, 96
        %v1134 = vpop.permute.xlu0 %1133
        %v1135 = vrot.slane %v1134, 2
        %v1136 = vsel %vm486, %v1134, %v1135
        %v1138 = vadd.f32 %v1129, %v1136
        %s1139 = sld [smem:[#allocation8 + $0x19]]
        %s1140 = sld [smem:[#allocation8 + $0x4a]]
        %v1141 = vld [vmem:[#allocation2 + $0x2] sm:$0x3f]
        %v1142 = vstv %s1139
        %v1143 = vmul.f32 %v1142, %v1141
        %1145 = vrot.lane.b32.xlu0 %v1143, 80
        %v1146 = vpop.permute.xlu0 %1145
        %v1147 = vrot.slane %v1146, 6
        %v1148 = vsel %vm507, %v1147, %v1146
        %v1150 = vadd.f32 %v1138, %v1148
        %v1151 = vld [vmem:[%s437 + $0x2] sm:$0x3f]
        %v1152 = vstv %s1140
        %v1153 = vmul.f32 %v1152, %v1151
        %1155 = vrot.lane.b32.xlu0 %v1153, 80
        %v1156 = vpop.permute.xlu0 %1155
        %v1157 = vrot.slane %v1156, 6
        %v1158 = vsel %vm507, %v1157, %v1156
        %v1160 = vadd.f32 %v1150, %v1158
        %s1161 = sld [smem:[#allocation8 + $0x20]]
        %s1162 = sld [smem:[#allocation8 + $0x51]]
        %v1163 = vstv %s1161
        %v1164 = vmul.f32 %v1163, %v1141
        %1166 = vrot.lane.b32.xlu0 %v1164, 64
        %v1167 = vpop.permute.xlu0 %1166
        %v1168 = vrot.slane %v1167, 6
        %v1169 = vsel %vm529, %v1168, %v1167
        %v1171 = vadd.f32 %v1160, %v1169
        %v1172 = vstv %s1162
        %v1173 = vmul.f32 %v1172, %v1151
        %1175 = vrot.lane.b32.xlu0 %v1173, 64
        %v1176 = vpop.permute.xlu0 %1175
        %v1177 = vrot.slane %v1176, 6
        %v1178 = vsel %vm529, %v1177, %v1176
        %v1180 = vadd.f32 %v1171, %v1178
        %s1181 = sld [smem:[#allocation8 + $0x27]]
        %s1182 = sld [smem:[#allocation8 + $0x58]]
        %v1183 = vstv %s1181
        %v1184 = vmul.f32 %v1183, %v1141
        %1186 = vrot.lane.b32.xlu0 %v1184, 48
        %v1187 = vpop.permute.xlu0 %1186
        %v1188 = vrot.slane %v1187, 6
        %v1189 = vsel %vm551, %v1188, %v1187
        %v1191 = vadd.f32 %v1180, %v1189
        %v1192 = vstv %s1182
        %v1193 = vmul.f32 %v1192, %v1151
        %1195 = vrot.lane.b32.xlu0 %v1193, 48
        %v1196 = vpop.permute.xlu0 %1195
        %v1197 = vrot.slane %v1196, 6
        %v1198 = vsel %vm551, %v1197, %v1196
        %v1200 = vadd.f32 %v1191, %v1198
        %s1201 = sld [smem:[#allocation8 + $0x2e]]
        %s1202 = sld [smem:[#allocation8 + $0x5f]]
        %v1203 = vstv %s1201
        %v1204 = vmul.f32 %v1203, %v1141
        %1206 = vrot.lane.b32.xlu0 %v1204, 32
        %v1207 = vpop.permute.xlu0 %1206
        %v1208 = vrot.slane %v1207, 6
        %v1209 = vsel %vm572, %v1208, %v1207
        %v1211 = vadd.f32 %v1200, %v1209
        %v1212 = vstv %s1202
        %v1213 = vmul.f32 %v1212, %v1151
        %1215 = vrot.lane.b32.xlu0 %v1213, 32
        %v1216 = vpop.permute.xlu0 %1215
        %v1217 = vrot.slane %v1216, 6
        %v1218 = vsel %vm572, %v1217, %v1216
        %v1220 = vadd.f32 %v1211, %v1218
        %s1221 = scalar_lea.vmem [#allocation4], 4
        %v1222 = vld [vmem:[%s1221] ss:$8 sm:$0x3]
        %v1224 = vperm.slane %v1222, 0
        %v1225 = vperm.slane %v1222, 1
        %1229 = vst [vmem:[#allocation1] ss:$4 sm:$0xff] %v1220
        %v1230 = vld.sshfl [vmem:[#allocation1] sm:$0xff pattern:$0x73625140]
        %v1231 = vld.sshfl [vmem:[#allocation1 + $0x8] sm:$0xff pattern:$0x73625140]
        %v1232 = vld.sshfl [vmem:[#allocation1 + $0x10] sm:$0xff pattern:$0x73625140]
        %1233 = vrot.lane.b32.xlu0 %v1230, 47
        %v1234 = vpop.permute.xlu0 %1233
        %1235 = vrot.lane.b32.xlu0 %v1231, 47
        %v1236 = vpop.permute.xlu0 %1235
        %1237 = vrot.lane.b32.xlu0 %v1232, 47
        %v1238 = vpop.permute.xlu0 %1237
        %vm1239 = vcmask 384000
        %v1240 = vsel %vm1239, %v1234, %v1236
        %v1241 = vsel %vm1239, %v1236, %v1238
        %v1244 = vmul.f32 %v1224, %v1240
        %v1245 = vmul.f32 %v1225, %v1241
        %v1246 = vadd.f32 %v1087, %v1244
        %v1247 = vadd.f32 %v1088, %v1245
        %s1248 = sld [smem:[#allocation8 + $0x5]]
        %s1249 = sld [smem:[#allocation8 + $0x36]]
        %v1250 = vld [vmem:[#allocation2] sm:$0x3f]
        %v1251 = vstv %s1248
        %v1252 = vmul.f32 %v1251, %v1250
        %v1253 = vadd.f32 %v1252, 0.0
        %v1254 = vld [vmem:[%s437] sm:$0x3f]
        %v1255 = vstv %s1249
        %v1256 = vmul.f32 %v1255, %v1254
        %v1257 = vadd.f32 %v1253, %v1256
        %s1258 = sld [smem:[#allocation8 + $0xc]]
        %s1259 = sld [smem:[#allocation8 + $0x3d]]
        %v1260 = vstv %s1258
        %v1261 = vmul.f32 %v1260, %v1250
        %1263 = vrot.lane.b32.xlu0 %v1261, 112
        %v1264 = vpop.permute.xlu0 %1263
        %v1265 = vrot.slane %v1264, 2
        %v1266 = vsel %vm465, %v1264, %v1265
        %v1268 = vadd.f32 %v1257, %v1266
        %v1269 = vstv %s1259
        %v1270 = vmul.f32 %v1269, %v1254
        %1272 = vrot.lane.b32.xlu0 %v1270, 112
        %v1273 = vpop.permute.xlu0 %1272
        %v1274 = vrot.slane %v1273, 2
        %v1275 = vsel %vm465, %v1273, %v1274
        %v1277 = vadd.f32 %v1268, %v1275
        %s1278 = sld [smem:[#allocation8 + $0x13]]
        %s1279 = sld [smem:[#allocation8 + $0x44]]
        %v1280 = vstv %s1278
        %v1281 = vmul.f32 %v1280, %v1250
        %1283 = vrot.lane.b32.xlu0 %v1281, 96
        %v1284 = vpop.permute.xlu0 %1283
        %v1285 = vrot.slane %v1284, 2
        %v1286 = vsel %vm486, %v1284, %v1285
        %v1288 = vadd.f32 %v1277, %v1286
        %v1289 = vstv %s1279
        %v1290 = vmul.f32 %v1289, %v1254
        %1292 = vrot.lane.b32.xlu0 %v1290, 96
        %v1293 = vpop.permute.xlu0 %1292
        %v1294 = vrot.slane %v1293, 2
        %v1295 = vsel %vm486, %v1293, %v1294
        %v1297 = vadd.f32 %v1288, %v1295
        %s1298 = sld [smem:[#allocation8 + $0x1a]]
        %s1299 = sld [smem:[#allocation8 + $0x4b]]
        %v1300 = vld [vmem:[#allocation2 + $0x2] sm:$0x3f]
        %v1301 = vstv %s1298
        %v1302 = vmul.f32 %v1301, %v1300
        %1304 = vrot.lane.b32.xlu0 %v1302, 80
        %v1305 = vpop.permute.xlu0 %1304
        %v1306 = vrot.slane %v1305, 6
        %v1307 = vsel %vm507, %v1306, %v1305
        %v1309 = vadd.f32 %v1297, %v1307
        %v1310 = vld [vmem:[%s437 + $0x2] sm:$0x3f]
        %v1311 = vstv %s1299
        %v1312 = vmul.f32 %v1311, %v1310
        %1314 = vrot.lane.b32.xlu0 %v1312, 80
        %v1315 = vpop.permute.xlu0 %1314
        %v1316 = vrot.slane %v1315, 6
        %v1317 = vsel %vm507, %v1316, %v1315
        %v1319 = vadd.f32 %v1309, %v1317
        %s1320 = sld [smem:[#allocation8 + $0x21]]
        %s1321 = sld [smem:[#allocation8 + $0x52]]
        %v1322 = vstv %s1320
        %v1323 = vmul.f32 %v1322, %v1300
        %1325 = vrot.lane.b32.xlu0 %v1323, 64
        %v1326 = vpop.permute.xlu0 %1325
        %v1327 = vrot.slane %v1326, 6
        %v1328 = vsel %vm529, %v1327, %v1326
        %v1330 = vadd.f32 %v1319, %v1328
        %v1331 = vstv %s1321
        %v1332 = vmul.f32 %v1331, %v1310
        %1334 = vrot.lane.b32.xlu0 %v1332, 64
        %v1335 = vpop.permute.xlu0 %1334
        %v1336 = vrot.slane %v1335, 6
        %v1337 = vsel %vm529, %v1336, %v1335
        %v1339 = vadd.f32 %v1330, %v1337
        %s1340 = sld [smem:[#allocation8 + $0x28]]
        %s1341 = sld [smem:[#allocation8 + $0x59]]
        %v1342 = vstv %s1340
        %v1343 = vmul.f32 %v1342, %v1300
        %1345 = vrot.lane.b32.xlu0 %v1343, 48
        %v1346 = vpop.permute.xlu0 %1345
        %v1347 = vrot.slane %v1346, 6
        %v1348 = vsel %vm551, %v1347, %v1346
        %v1350 = vadd.f32 %v1339, %v1348
        %v1351 = vstv %s1341
        %v1352 = vmul.f32 %v1351, %v1310
        %1354 = vrot.lane.b32.xlu0 %v1352, 48
        %v1355 = vpop.permute.xlu0 %1354
        %v1356 = vrot.slane %v1355, 6
        %v1357 = vsel %vm551, %v1356, %v1355
        %v1359 = vadd.f32 %v1350, %v1357
        %s1360 = sld [smem:[#allocation8 + $0x2f]]
        %s1361 = sld [smem:[#allocation8 + $0x60]]
        %v1362 = vstv %s1360
        %v1363 = vmul.f32 %v1362, %v1300
        %1365 = vrot.lane.b32.xlu0 %v1363, 32
        %v1366 = vpop.permute.xlu0 %1365
        %v1367 = vrot.slane %v1366, 6
        %v1368 = vsel %vm572, %v1367, %v1366
        %v1370 = vadd.f32 %v1359, %v1368
        %v1371 = vstv %s1361
        %v1372 = vmul.f32 %v1371, %v1310
        %1374 = vrot.lane.b32.xlu0 %v1372, 32
        %v1375 = vpop.permute.xlu0 %1374
        %v1376 = vrot.slane %v1375, 6
        %v1377 = vsel %vm572, %v1376, %v1375
        %v1379 = vadd.f32 %v1370, %v1377
        %s1380 = scalar_lea.vmem [#allocation4], 5
        %v1381 = vld [vmem:[%s1380] ss:$8 sm:$0x3]
        %v1383 = vperm.slane %v1381, 0
        %v1384 = vperm.slane %v1381, 1
        %1388 = vst [vmem:[#allocation1] ss:$4 sm:$0xff] %v1379
        %v1389 = vld.sshfl [vmem:[#allocation1] sm:$0xff pattern:$0x73625140]
        %v1390 = vld.sshfl [vmem:[#allocation1 + $0x8] sm:$0xff pattern:$0x73625140]
        %v1391 = vld.sshfl [vmem:[#allocation1 + $0x10] sm:$0xff pattern:$0x73625140]
        %1392 = vrot.lane.b32.xlu0 %v1389, 46
        %v1393 = vpop.permute.xlu0 %1392
        %1394 = vrot.lane.b32.xlu0 %v1390, 46
        %v1395 = vpop.permute.xlu0 %1394
        %1396 = vrot.lane.b32.xlu0 %v1391, 46
        %v1397 = vpop.permute.xlu0 %1396
        %vm1398 = vcmask 375808
        %v1399 = vsel %vm1398, %v1393, %v1395
        %v1400 = vsel %vm1398, %v1395, %v1397
        %v1403 = vmul.f32 %v1383, %v1399
        %v1404 = vmul.f32 %v1384, %v1400
        %v1405 = vadd.f32 %v1246, %v1403
        %v1406 = vadd.f32 %v1247, %v1404
        %s1407 = sld [smem:[#allocation8 + $0x6]]
        %s1408 = sld [smem:[#allocation8 + $0x37]]
        %v1409 = vld [vmem:[#allocation2] sm:$0x3f]
        %v1410 = vstv %s1407
        %v1411 = vmul.f32 %v1410, %v1409
        %v1412 = vadd.f32 %v1411, 0.0
        %v1413 = vld [vmem:[%s437] sm:$0x3f]
        %v1414 = vstv %s1408
        %v1415 = vmul.f32 %v1414, %v1413
        %v1416 = vadd.f32 %v1412, %v1415
        %s1417 = sld [smem:[#allocation8 + $0xd]]
        %s1418 = sld [smem:[#allocation8 + $0x3e]]
        %v1419 = vstv %s1417
        %v1420 = vmul.f32 %v1419, %v1409
        %1422 = vrot.lane.b32.xlu0 %v1420, 112
        %v1423 = vpop.permute.xlu0 %1422
        %v1424 = vrot.slane %v1423, 2
        %v1425 = vsel %vm465, %v1423, %v1424
        %v1427 = vadd.f32 %v1416, %v1425
        %v1428 = vstv %s1418
        %v1429 = vmul.f32 %v1428, %v1413
        %1431 = vrot.lane.b32.xlu0 %v1429, 112
        %v1432 = vpop.permute.xlu0 %1431
        %v1433 = vrot.slane %v1432, 2
        %v1434 = vsel %vm465, %v1432, %v1433
        %v1436 = vadd.f32 %v1427, %v1434
        %s1437 = sld [smem:[#allocation8 + $0x14]]
        %s1438 = sld [smem:[#allocation8 + $0x45]]
        %v1439 = vstv %s1437
        %v1440 = vmul.f32 %v1439, %v1409
        %1442 = vrot.lane.b32.xlu0 %v1440, 96
        %v1443 = vpop.permute.xlu0 %1442
        %v1444 = vrot.slane %v1443, 2
        %v1445 = vsel %vm486, %v1443, %v1444
        %v1447 = vadd.f32 %v1436, %v1445
        %v1448 = vstv %s1438
        %v1449 = vmul.f32 %v1448, %v1413
        %1451 = vrot.lane.b32.xlu0 %v1449, 96
        %v1452 = vpop.permute.xlu0 %1451
        %v1453 = vrot.slane %v1452, 2
        %v1454 = vsel %vm486, %v1452, %v1453
        %v1456 = vadd.f32 %v1447, %v1454
        %s1457 = sld [smem:[#allocation8 + $0x1b]]
        %s1458 = sld [smem:[#allocation8 + $0x4c]]
        %v1459 = vld [vmem:[#allocation2 + $0x2] sm:$0x3f]
        %v1460 = vstv %s1457
        %v1461 = vmul.f32 %v1460, %v1459
        %1463 = vrot.lane.b32.xlu0 %v1461, 80
        %v1464 = vpop.permute.xlu0 %1463
        %v1465 = vrot.slane %v1464, 6
        %v1466 = vsel %vm507, %v1465, %v1464
        %v1468 = vadd.f32 %v1456, %v1466
        %v1469 = vld [vmem:[%s437 + $0x2] sm:$0x3f]
        %v1470 = vstv %s1458
        %v1471 = vmul.f32 %v1470, %v1469
        %1473 = vrot.lane.b32.xlu0 %v1471, 80
        %v1474 = vpop.permute.xlu0 %1473
        %v1475 = vrot.slane %v1474, 6
        %v1476 = vsel %vm507, %v1475, %v1474
        %v1478 = vadd.f32 %v1468, %v1476
        %s1479 = sld [smem:[#allocation8 + $0x22]]
        %s1480 = sld [smem:[#allocation8 + $0x53]]
        %v1481 = vstv %s1479
        %v1482 = vmul.f32 %v1481, %v1459
        %1484 = vrot.lane.b32.xlu0 %v1482, 64
        %v1485 = vpop.permute.xlu0 %1484
        %v1486 = vrot.slane %v1485, 6
        %v1487 = vsel %vm529, %v1486, %v1485
        %v1489 = vadd.f32 %v1478, %v1487
        %v1490 = vstv %s1480
        %v1491 = vmul.f32 %v1490, %v1469
        %1493 = vrot.lane.b32.xlu0 %v1491, 64
        %v1494 = vpop.permute.xlu0 %1493
        %v1495 = vrot.slane %v1494, 6
        %v1496 = vsel %vm529, %v1495, %v1494
        %v1498 = vadd.f32 %v1489, %v1496
        %s1499 = sld [smem:[#allocation8 + $0x29]]
        %s1500 = sld [smem:[#allocation8 + $0x5a]]
        %v1501 = vstv %s1499
        %v1502 = vmul.f32 %v1501, %v1459
        %1504 = vrot.lane.b32.xlu0 %v1502, 48
        %v1505 = vpop.permute.xlu0 %1504
        %v1506 = vrot.slane %v1505, 6
        %v1507 = vsel %vm551, %v1506, %v1505
        %v1509 = vadd.f32 %v1498, %v1507
        %v1510 = vstv %s1500
        %v1511 = vmul.f32 %v1510, %v1469
        %1513 = vrot.lane.b32.xlu0 %v1511, 48
        %v1514 = vpop.permute.xlu0 %1513
        %v1515 = vrot.slane %v1514, 6
        %v1516 = vsel %vm551, %v1515, %v1514
        %v1518 = vadd.f32 %v1509, %v1516
        %s1519 = sld [smem:[#allocation8 + $0x30]]
        %s1520 = sld [smem:[#allocation8 + $0x61]]
        %v1521 = vstv %s1519
        %v1522 = vmul.f32 %v1521, %v1459
        %1524 = vrot.lane.b32.xlu0 %v1522, 32
        %v1525 = vpop.permute.xlu0 %1524
        %v1526 = vrot.slane %v1525, 6
        %v1527 = vsel %vm572, %v1526, %v1525
        %v1529 = vadd.f32 %v1518, %v1527
        %v1530 = vstv %s1520
        %v1531 = vmul.f32 %v1530, %v1469
        %1533 = vrot.lane.b32.xlu0 %v1531, 32
        %v1534 = vpop.permute.xlu0 %1533
        %v1535 = vrot.slane %v1534, 6
        %v1536 = vsel %vm572, %v1535, %v1534
        %v1538 = vadd.f32 %v1529, %v1536
        %s1539 = scalar_lea.vmem [#allocation4], 6
        %v1540 = vld [vmem:[%s1539] ss:$8 sm:$0x3]
        %v1542 = vperm.slane %v1540, 0
        %v1543 = vperm.slane %v1540, 1
        %1547 = vst [vmem:[#allocation1] ss:$4 sm:$0xff] %v1538
        %v1548 = vld.sshfl [vmem:[#allocation1] sm:$0xff pattern:$0x73625140]
        %v1549 = vld.sshfl [vmem:[#allocation1 + $0x8] sm:$0xff pattern:$0x73625140]
        %v1550 = vld.sshfl [vmem:[#allocation1 + $0x10] sm:$0xff pattern:$0x73625140]
        %1551 = vrot.lane.b32.xlu0 %v1548, 45
        %v1552 = vpop.permute.xlu0 %1551
        %1553 = vrot.lane.b32.xlu0 %v1549, 45
        %v1554 = vpop.permute.xlu0 %1553
        %1555 = vrot.lane.b32.xlu0 %v1550, 45
        %v1556 = vpop.permute.xlu0 %1555
        %vm1557 = vcmask 367616
        %v1558 = vsel %vm1557, %v1552, %v1554
        %v1559 = vsel %vm1557, %v1554, %v1556
        %v1562 = vmul.f32 %v1542, %v1558
        %v1563 = vmul.f32 %v1543, %v1559
        %v1564 = vadd.f32 %v1405, %v1562
        %v1565 = vadd.f32 %v1406, %v1563
        %s1566 = sld [smem:[#allocation3]]
        %v1567 = vstv %s1566
        %v1568 = vadd.f32 %v1564, %v1567
        %v1569 = vadd.f32 %v1565, %v1567
        %v1570 = vmax.f32 %v1568, 0.0
        %v1571 = vmax.f32 %v1569, 0.0
        %v1572 = vsub.f32 0.0, %v1570
        %v1573 = vsub.f32 0.0, %v1571
        %v1574 = vmul.f32 %v1572, 1.442695
        %v1575 = vpow.pop %v1574
        %v1576 = vmul.f32 %v1573, 1.442695
        %v1577 = vpow.pop %v1576
        %v1578 = vadd.f32 %v1575, 1.0
        %v1579 = vadd.f32 %v1577, 1.0
        %v1580 = vrcp.pop %v1578
        %v1581 = vmul.f32 %v1578, %v1580
        %v1582 = vsub.f32 1.0, %v1581
        %v1583 = vmul.f32 %v1580, %v1582
        %v1584 = vadd.f32 %v1580, %v1583
        %vm1585 = vweird.f32 %v1578
        %vm1586 = vweird.f32 %v1580
        %vm1587 = vmor %vm1585, %vm1586
        %v1588 = vsel %vm1587, %v1580, %v1584
        %v1589 = vand.u32 2147483647, %v1578
        %vm1590 = vcmp.eq.f32.partialorder %v1589, 8.507059e+37
        %v1591 = vand.u32 %v1578, 2147483648
        %v1592 = vor.u32 1.1754944e-38, %v1591
        %v1593 = vsel %vm1590, %v1592, %v1588
        %v1594 = vmul.f32 1.0, %v1593
        %v1595 = vrcp.pop %v1579
        %v1596 = vmul.f32 %v1579, %v1595
        %v1597 = vsub.f32 1.0, %v1596
        %v1598 = vmul.f32 %v1595, %v1597
        %v1599 = vadd.f32 %v1595, %v1598
        %vm1600 = vweird.f32 %v1579
        %vm1601 = vweird.f32 %v1595
        %vm1602 = vmor %vm1600, %vm1601
        %v1603 = vsel %vm1602, %v1595, %v1599
        %v1604 = vand.u32 2147483647, %v1579
        %vm1605 = vcmp.eq.f32.partialorder %v1604, 8.507059e+37
        %v1606 = vand.u32 %v1579, 2147483648
        %v1607 = vor.u32 1.1754944e-38, %v1606
        %v1608 = vsel %vm1605, %v1607, %v1603
        %v1609 = vmul.f32 1.0, %v1608
        %v1610 = vperm.slane %v1594, 1
        %v1611 = vperm.slane %v1609, 1
        %v1614 = vrot.slane %v1611, 4
        %v1615 = vsel %vm332, %v1610, %v1614
        %v1617 = vmul.f32 %v314, %v1615
        %v1620 = vrot.slane %v1594, 1
        %v1621 = vrot.slane %v1609, 1
        %v1624 = vsub.f32 %v1594, %v1620
        %v1625 = vsub.f32 %v1609, %v1621
        %v1626 = vperm.slane %v1624, 0
        %v1627 = vperm.slane %v1625, 0
        %v1628 = vmul.f32 %v327, %v1626
        %v1629 = vmul.f32 %v328, %v1627
        %v1632 = vrot.slane %v1629, 4
        %v1633 = vsel %vm332, %v1628, %v1632
        %v1635 = vadd.f32 %v1617, %v1633
        %1636 = vst [vmem:[%s300] sm:$0xff] %v1635
        %s1637 = sand.u32 %s172, 1
        %s1638 = scalar_lea.sflag [#allocation6], %s1637
        %s1639 = sand.u32 %s172, 1
        %s1640 = smul.addr %s1639, 8
        %s1641 = scalar_lea.vmem [#allocation9], %s1640
        // Predicated region
        $region53: #{tpu_custom_call.1} parent=43 // pred_check
          %p1642 = pneg %p182
        $region54: #{tpu_custom_call.1} parent=43 // pred_check_branch
          %1644 = sbr.rel (%p1642) target = $region56
        $region55: #{tpu_custom_call.1} parent=43 // pred_region
          %1646 = vsyncadd %s1638, 0
          %s1647 = smul.addr %s23, 2
          %s1648 = smul.addr %s1647, 4
          %s1649 = scalar_lea.hbm %s6, %s1648
          %s1651 = sshll.u32 %s1641, 4
          %s1652 = int_to_ptr.vmem [resolvable:$true] %s1651
          %s1653 = sshll.u32 %s1649, 4
          %s1654 = int_to_ptr.hbm [resolvable:$true] %s1653
          %1656 = dma.vmem_to_hbm [thread:$0]  %s1652, 128, %s1654, %s1638
        $region56: #{tpu_custom_call.1} parent=43 // pred_fallthru
          _
      $region44: #{tpu_custom_call.1} parent=5 // pred_fallthru
        _
      %p1657 = scmp.le.s32.totalorder 2, %s18
      // Predicated region
      $region57: #{tpu_custom_call.1} parent=5 // pred_check
        %p1658 = pneg %p1657
      $region58: #{tpu_custom_call.1} parent=5 // pred_check_branch
        %1660 = sbr.rel (%p1658) target = $region60
      $region59: #{tpu_custom_call.1} parent=5 // pred_region
        %s1661 = ssub.s32 %s18, 2
        // Predicated region
        $region61: #{tpu_custom_call.1} parent=59 // pred_check
          %p1662 = pneg %p188
        $region62: #{tpu_custom_call.1} parent=59 // pred_check_branch
          %1664 = sbr.rel (%p1662) target = $region64
        $region63: #{tpu_custom_call.1} parent=59 // pred_region
          %s1665 = sand.u32 %s173, 1
          %s1666 = scalar_lea.sflag [#allocation6], %s1665
          %s1667 = sand.u32 %s173, 1
          %s1668 = smul.addr %s1667, 8
          %s1669 = scalar_lea.vmem [#allocation9], %s1668
          %1671 = dma.done %s1666, 128
        $region64: #{tpu_custom_call.1} parent=59 // pred_fallthru
          _
      $region60: #{tpu_custom_call.1} parent=5 // pred_fallthru
        _
    $region6: #{tpu_custom_call.1} parent=1 // loop_footer
      %s22 = sadd.s32 1, %s18
    $region7: #{tpu_custom_call.1} parent=1 // loop_footer_branch
      %17 = sbr.rel target = $region3
    $region8: #{tpu_custom_call.1} parent=1 // loop_exit
      _
    %1672 = vsyncpa [#allocation5], 1
    %s1673 = scalar_lea.sflag [#allocation5], 1
    %1674 = vsyncpa %s1673, 1
    %1675 = vsyncpa [#allocation6], 1
    %s1676 = scalar_lea.sflag [#allocation6], 1
    %1677 = vsyncpa %s1676, 1
    %1678 = vsyncpa [#allocation7], 1
    %s1679 = scalar_lea.sflag [#allocation7], 1
    %1680 = vsyncpa %s1679, 1

</llo_original>
